<compile_context>
chip_gen: v7x
topology: tpu7x:2x2x1
jax: 0.10.0
libtpu: 0.0.40
codegen_flags: <defaults>
</compile_context>

<pallas_src>
import functools
import math

import jax
import jax.numpy as jnp
import numpy as np
from jax.experimental import pallas as pl
from jax.experimental.pallas import tpu as pltpu


# ----------------------------------------------------------------------------
# Pallas kernel: one (batch, HW-tile) block per grid step, channels-first.
# ----------------------------------------------------------------------------
def _ocr_kernel(x_ref, pcf_ref, pcl_ref,
                wx_ref, bp1_ref, wp2_ref, bp2_ref,
                wo1_ref, bo1_ref, wo2_ref, bo2_ref,
                wd_ref, bd_ref, wu_ref, bu_ref,
                wfc_ref, bf_ref,
                out_ref, *, key_channels):
    bf16 = jnp.bfloat16

    def mm(a, b):  # bf16 operands, f32 accumulation on the MXU
        return jnp.dot(a, b, preferred_element_type=jnp.float32)

    relu = lambda t: jnp.maximum(t, 0.0)

    x = x_ref[0]        # (Cin, T)  bf16 — pixels on lanes
    p_cf = pcf_ref[0]   # (Cin, Kp) bf16 — channels-first proxy (for f_down)
    p_cl = pcl_ref[0]   # (Kp, Cin) bf16 — rows-first proxy (for f_object)

    K = key_channels

    # Fused x-projections: rows [0:K] -> f_pixel stage 1, rows [K:] -> the
    # feats-half of the final concat conv (exact split-matmul of the concat).
    qx = mm(wx_ref[...], x)                                 # (K + Cout, T) f32
    q = relu(qx[:K] + bp1_ref[...]).astype(bf16)            # (K, T)
    x_half = qx[K:]                                         # (Cout, T) — bias added later

    # f_pixel stage 2 -> query (K, T)
    q = relu(mm(wp2_ref[...], q) + bp2_ref[...]).astype(bf16)

    # f_object -> key (Kp, K)   (proxy in row layout: plain row-major matmuls)
    k = relu(mm(p_cl, wo1_ref[...]) + bo1_ref[...]).astype(bf16)
    k = relu(mm(k, wo2_ref[...]) + bo2_ref[...]).astype(bf16)

    # f_down -> value (K, Kp)   (channels-first so ctx comes out channels-first)
    v = relu(mm(wd_ref[...], p_cf) + bd_ref[...]).astype(bf16)

    # Attention over the Kp proxies; softmax along the proxy (sublane) axis, f32.
    sim = mm(k, q) * (K ** -0.5)                            # (Kp, T)
    sim = sim - jnp.max(sim, axis=0, keepdims=True)
    e = jnp.exp(sim)
    attn = e * pl.reciprocal(jnp.sum(e, axis=0, keepdims=True), approx=True)

    ctx = mm(v, attn.astype(bf16))                          # (K, T)

    # f_up: K -> Cin
    ctx = relu(mm(wu_ref[...], ctx.astype(bf16)) + bu_ref[...])   # (Cin, T)

    # conv_bn_dropout on cat([context, feats]) == split matmul (context half
    # here; feats half already computed in the fused x-projection above).
    out = mm(wfc_ref[...], ctx.astype(bf16)) + x_half + bf_ref[...]
    out_ref[0] = relu(out).astype(out_ref.dtype)


# ----------------------------------------------------------------------------
# Wrapper
# ----------------------------------------------------------------------------
def spatial_ocr_forward(feats_nchw, proxy_nck1, params, key_channels, hw_tile=None):
    """feats_nchw: (B, Cin, H, W) f32 ; proxy_nck1: (B, Cin, Kp, 1) f32."""
    B, Cin, H, W = feats_nchw.shape
    _, _, Kp, _ = proxy_nck1.shape
    HW = H * W
    Cout = params["wf"].shape[1]
    K = key_channels

    if hw_tile is None:
        # Lane (N) dim of every matmul: keep it a multiple of 256 when possible
        # (v6e/v7x MXU is 2x256x256; 128 suffices on v5e) and capped so x/out
        # tiles + double buffers stay well inside v7x's 64 MiB VMEM.  For large
        # production shapes on the 128 MiB parts (v5e/v6e), raise the tile and
        # vmem_limit_bytes in CompilerParams together.
        hw_tile = min(HW, 2048)
        if hw_tile >= 256:
            hw_tile = (hw_tile // 256) * 256
    hw_tile = min(hw_tile, HW)
    n_hw = pl.cdiv(HW, hw_tile)

    bf16, f32 = jnp.bfloat16, jnp.float32

    # Channels-first pixel slab: pure reshape, no HBM transpose of the big map.
    x = feats_nchw.reshape(B, Cin, HW).astype(bf16)
    proxy_cf = proxy_nck1.reshape(B, Cin, Kp).astype(bf16)      # (B, Cin, Kp)
    proxy_cl = jnp.transpose(proxy_cf, (0, 2, 1))               # (B, Kp, Cin) — tiny

    colb = lambda b: b.reshape(-1, 1).astype(f32)   # bias for channels-first outputs
    rowb = lambda b: b.reshape(1, -1).astype(f32)   # bias for proxy-row outputs

    # Weights pre-transposed to (out_chan, in_chan) for channels-first matmuls.
    # f_pixel stage-1 and the feats-half of the concat conv share x -> fuse.
    w_x = jnp.concatenate([params["wp1"].T, params["wf"][Cin:, :].T], axis=0).astype(bf16)
    wp2 = params["wp2"].T.astype(bf16)
    wo1 = params["wo1"].astype(bf16)                 # used row-major on proxy rows
    wo2 = params["wo2"].astype(bf16)
    wd = params["wd"].T.astype(bf16)
    wu = params["wu"].T.astype(bf16)
    wfc = params["wf"][:Cin, :].T.astype(bf16)       # context half of the concat conv
    bp1, bp2 = colb(params["bp1"]), colb(params["bp2"])
    bo1, bo2 = rowb(params["bo1"]), rowb(params["bo2"])
    bd, bu, bfb = colb(params["bd"]), colb(params["bu"]), colb(params["bf"])

    def const_spec(arr):
        nd = arr.ndim
        # Constant block index -> fetched once, never re-DMA'd across the grid.
        # TODO(synk): single-buffer these (pipeline_mode=pl.Buffered(1)) when
        # tuning large production shapes on v7x to reclaim the second VMEM copy.
        return pl.BlockSpec(arr.shape, lambda b, t: (0,) * nd)

    weights = (w_x, bp1, wp2, bp2, wo1, bo1, wo2, bo2, wd, bd, wu, bu, wfc, bfb)

    out = pl.pallas_call(
        functools.partial(_ocr_kernel, key_channels=K),
        out_shape=jax.ShapeDtypeStruct((B, Cout, HW), jnp.float32),
        grid_spec=pltpu.PrefetchScalarGridSpec(
            num_scalar_prefetch=0,
            grid=(B, n_hw),
            in_specs=[
                pl.BlockSpec((1, Cin, hw_tile), lambda b, t: (b, 0, t)),   # x tile
                pl.BlockSpec((1, Cin, Kp), lambda b, t: (b, 0, 0)),        # proxy (ch-first)
                pl.BlockSpec((1, Kp, Cin), lambda b, t: (b, 0, 0)),        # proxy (rows)
            ] + [const_spec(a) for a in weights],
            out_specs=pl.BlockSpec((1, Cout, hw_tile), lambda b, t: (b, 0, t)),
        ),
        compiler_params=pltpu.CompilerParams(
            dimension_semantics=("parallel", "parallel")),
    )(x, proxy_cf, proxy_cl, *weights)

    # (B, Cout, HW) -> (B, Cout, H, W): pure reshape, no transpose needed.
    return out.reshape(B, Cout, H, W)


# ----------------------------------------------------------------------------
# Deterministic parameter construction (conv1x1 + folded eval-mode BN)
# ----------------------------------------------------------------------------
def _fold_conv_bn(key, cin, cout, eps=1e-5):
    k1, k2, k3, k4, k5, k6 = jax.random.split(key, 6)
    w = jax.random.normal(k1, (cin, cout), jnp.float32) * (1.0 / math.sqrt(cin))
    b = jax.random.normal(k2, (cout,), jnp.float32) * 0.1
    gamma = 1.0 + 0.1 * jax.random.normal(k3, (cout,), jnp.float32)
    beta = 0.1 * jax.random.normal(k4, (cout,), jnp.float32)
    mean = 0.1 * jax.random.normal(k5, (cout,), jnp.float32)
    var = jnp.abs(jax.random.normal(k6, (cout,), jnp.float32)) + 0.5
    scale = gamma / jnp.sqrt(var + eps)
    w_eff = w * scale[None, :]
    b_eff = (b - mean) * scale + beta
    return w_eff, b_eff.reshape(1, cout)


def make_params(in_channels, key_channels, out_channels, seed=0):
    keys = jax.random.split(jax.random.PRNGKey(seed), 8)
    p = {}
    p["wp1"], p["bp1"] = _fold_conv_bn(keys[0], in_channels, key_channels)
    p["wp2"], p["bp2"] = _fold_conv_bn(keys[1], key_channels, key_channels)
    p["wo1"], p["bo1"] = _fold_conv_bn(keys[2], in_channels, key_channels)
    p["wo2"], p["bo2"] = _fold_conv_bn(keys[3], key_channels, key_channels)
    p["wd"], p["bd"] = _fold_conv_bn(keys[4], in_channels, key_channels)
    p["wu"], p["bu"] = _fold_conv_bn(keys[5], key_channels, in_channels)
    p["wf"], p["bf"] = _fold_conv_bn(keys[6], 2 * in_channels, out_channels)
    return p


# ----------------------------------------------------------------------------
# Pure-JAX reference in the module's natural orientation.  compute_dtype=bf16
# mirrors the kernel's bf16-operand / f32-accumulate matmuls so the comparison
# isolates kernel bugs rather than bf16 rounding.
# ----------------------------------------------------------------------------
def reference_forward(feats, proxy, p, key_channels, compute_dtype=jnp.float32):
    B, Cin, H, W = feats.shape
    Kp = proxy.shape[2]
    cd = compute_dtype

    def mm(a, b):
        return jnp.matmul(a.astype(cd), b.astype(cd),
                          preferred_element_type=jnp.float32)

    relu = lambda t: jnp.maximum(t, 0.0)
    x = jnp.transpose(feats.reshape(B, Cin, H * W), (0, 2, 1))     # (B, HW, Cin)
    pr = jnp.transpose(proxy.reshape(B, Cin, Kp), (0, 2, 1))       # (B, Kp, Cin)
    q = relu(mm(relu(mm(x, p["wp1"]) + p["bp1"]), p["wp2"]) + p["bp2"])
    k = relu(mm(relu(mm(pr, p["wo1"]) + p["bo1"]), p["wo2"]) + p["bo2"])
    v = relu(mm(pr, p["wd"]) + p["bd"])
    sim = jax.nn.softmax(mm(q, jnp.swapaxes(k, -1, -2)) * key_channels ** -0.5, axis=-1)
    ctx = relu(mm(mm(sim, v), p["wu"]) + p["bu"])
    out = relu(mm(ctx, p["wf"][:Cin]) + mm(x, p["wf"][Cin:]) + p["bf"])
    return jnp.transpose(out, (0, 2, 1)).reshape(B, -1, H, W)


if __name__ == "__main__":
    B, Cin, H, W = 2, 32, 16, 16        # feats: (N, C, H, W)
    Kp = 8                               # number of proxy/object regions
    key_channels, out_channels = 16, 32

    kx, kp = jax.random.split(jax.random.PRNGKey(0))
    feats = jax.random.normal(kx, (B, Cin, H, W), jnp.float32)
    proxy = jax.random.normal(kp, (B, Cin, Kp, 1), jnp.float32)

    params = make_params(Cin, key_channels, out_channels, seed=0)

    # hw_tile=128 -> grid=(2, 2): exercises the HW-tiling grid axis in the demo.
    out = spatial_ocr_forward(feats, proxy, params, key_channels, hw_tile=128)
    out = jax.block_until_ready(out)

    ref = jax.block_until_ready(
        reference_forward(feats, proxy, params, key_channels,
                          compute_dtype=jnp.bfloat16))
    np.testing.assert_allclose(np.asarray(out), np.asarray(ref), rtol=2e-2, atol=2e-2)

    print("KERNEL_OK")
</pallas_src>

<mosaic_0001>
module attributes {stable_mosaic.version = 11 : i64} {
  func.func @_ocr_kernel(%arg0: i32, %arg1: i32, %arg2: memref<1x32x128xbf16, #tpu.memory_space<vmem>>, %arg3: memref<1x32x8xbf16, #tpu.memory_space<vmem>>, %arg4: memref<1x8x32xbf16, #tpu.memory_space<vmem>>, %arg5: memref<48x32xbf16, #tpu.memory_space<vmem>>, %arg6: memref<16x1xf32, #tpu.memory_space<vmem>>, %arg7: memref<16x16xbf16, #tpu.memory_space<vmem>>, %arg8: memref<16x1xf32, #tpu.memory_space<vmem>>, %arg9: memref<32x16xbf16, #tpu.memory_space<vmem>>, %arg10: memref<1x16xf32, #tpu.memory_space<vmem>>, %arg11: memref<16x16xbf16, #tpu.memory_space<vmem>>, %arg12: memref<1x16xf32, #tpu.memory_space<vmem>>, %arg13: memref<16x32xbf16, #tpu.memory_space<vmem>>, %arg14: memref<16x1xf32, #tpu.memory_space<vmem>>, %arg15: memref<32x16xbf16, #tpu.memory_space<vmem>>, %arg16: memref<32x1xf32, #tpu.memory_space<vmem>>, %arg17: memref<32x32xbf16, #tpu.memory_space<vmem>>, %arg18: memref<32x1xf32, #tpu.memory_space<vmem>>, %arg19: memref<1x32x128xf32, #tpu.memory_space<vmem>>) attributes {dimension_semantics = [#tpu.dimension_semantics<parallel>, #tpu.dimension_semantics<parallel>], iteration_bounds = array<i64: 2, 2>, scalar_prefetch = 0 : i64, scratch_operands = 0 : i64, tpu.core_type = #tpu.core_type<tc>, window_params = [{transform_indices = @transform_0, window_bounds = array<i64: 1, 32, 128>}, {transform_indices = @transform_1, window_bounds = array<i64: 1, 32, 8>}, {transform_indices = @transform_2, window_bounds = array<i64: 1, 8, 32>}, {pipeline_mode = #tpu.pipeline_mode<synchronous>, transform_indices = @transform_3, window_bounds = array<i64: 48, 32>}, {pipeline_mode = #tpu.pipeline_mode<synchronous>, transform_indices = @transform_4, window_bounds = array<i64: 16, 1>}, {pipeline_mode = #tpu.pipeline_mode<synchronous>, transform_indices = @transform_5, window_bounds = array<i64: 16, 16>}, {pipeline_mode = #tpu.pipeline_mode<synchronous>, transform_indices = @transform_6, window_bounds = array<i64: 16, 1>}, {pipeline_mode = #tpu.pipeline_mode<synchronous>, transform_indices = @transform_7, window_bounds = array<i64: 32, 16>}, {pipeline_mode = #tpu.pipeline_mode<synchronous>, transform_indices = @transform_8, window_bounds = array<i64: 1, 16>}, {pipeline_mode = #tpu.pipeline_mode<synchronous>, transform_indices = @transform_9, window_bounds = array<i64: 16, 16>}, {pipeline_mode = #tpu.pipeline_mode<synchronous>, transform_indices = @transform_10, window_bounds = array<i64: 1, 16>}, {pipeline_mode = #tpu.pipeline_mode<synchronous>, transform_indices = @transform_11, window_bounds = array<i64: 16, 32>}, {pipeline_mode = #tpu.pipeline_mode<synchronous>, transform_indices = @transform_12, window_bounds = array<i64: 16, 1>}, {pipeline_mode = #tpu.pipeline_mode<synchronous>, transform_indices = @transform_13, window_bounds = array<i64: 32, 16>}, {pipeline_mode = #tpu.pipeline_mode<synchronous>, transform_indices = @transform_14, window_bounds = array<i64: 32, 1>}, {pipeline_mode = #tpu.pipeline_mode<synchronous>, transform_indices = @transform_15, window_bounds = array<i64: 32, 32>}, {pipeline_mode = #tpu.pipeline_mode<synchronous>, transform_indices = @transform_16, window_bounds = array<i64: 32, 1>}, {transform_indices = @transform_17, window_bounds = array<i64: 1, 32, 128>}]} {
    %c0 = arith.constant 0 : index
    %c0_0 = arith.constant 0 : index
    %c0_1 = arith.constant 0 : index
    %0 = vector.load %arg2[%c0, %c0_0, %c0_1] : memref<1x32x128xbf16, #tpu.memory_space<vmem>>, vector<1x32x128xbf16>
    %1 = vector.shape_cast %0 : vector<1x32x128xbf16> to vector<32x128xbf16>
    %c0_2 = arith.constant 0 : index
    %c0_3 = arith.constant 0 : index
    %c0_4 = arith.constant 0 : index
    %2 = vector.load %arg3[%c0_2, %c0_3, %c0_4] : memref<1x32x8xbf16, #tpu.memory_space<vmem>>, vector<1x32x8xbf16>
    %3 = vector.shape_cast %2 : vector<1x32x8xbf16> to vector<32x8xbf16>
    %c0_5 = arith.constant 0 : index
    %c0_6 = arith.constant 0 : index
    %c0_7 = arith.constant 0 : index
    %4 = vector.load %arg4[%c0_5, %c0_6, %c0_7] : memref<1x8x32xbf16, #tpu.memory_space<vmem>>, vector<1x8x32xbf16>
    %5 = vector.shape_cast %4 : vector<1x8x32xbf16> to vector<8x32xbf16>
    %c0_8 = arith.constant 0 : index
    %c0_9 = arith.constant 0 : index
    %6 = vector.load %arg5[%c0_8, %c0_9] : memref<48x32xbf16, #tpu.memory_space<vmem>>, vector<48x32xbf16>
    %cst = arith.constant dense<0.000000e+00> : vector<48x128xf32>
    %7 = tpu.matmul %6, %1, %cst {dimension_numbers = #tpu.dot_dimension_numbers<[1], [0], [0], [1], [0, 0, 1, 1], [], []>} : vector<48x32xbf16>, vector<32x128xbf16>, vector<48x128xf32> -> vector<48x128xf32>
    %8 = vector.extract_strided_slice %7 {offsets = [0, 0], sizes = [16, 128], strides = [1, 1]} : vector<48x128xf32> to vector<16x128xf32>
    %c0_10 = arith.constant 0 : index
    %c0_11 = arith.constant 0 : index
    %9 = vector.load %arg6[%c0_10, %c0_11] : memref<16x1xf32, #tpu.memory_space<vmem>>, vector<16x1xf32>
    %10 = vector.broadcast %9 : vector<16x1xf32> to vector<16x128xf32>
    %11 = arith.addf %8, %10 : vector<16x128xf32>
    %cst_12 = arith.constant 0.000000e+00 : f32
    %12 = vector.broadcast %cst_12 : f32 to vector<16x128xf32>
    %13 = arith.maximumf %11, %12 : vector<16x128xf32>
    %14 = arith.truncf %13 : vector<16x128xf32> to vector<16x128xbf16>
    %15 = vector.extract_strided_slice %7 {offsets = [16, 0], sizes = [32, 128], strides = [1, 1]} : vector<48x128xf32> to vector<32x128xf32>
    %c0_13 = arith.constant 0 : index
    %c0_14 = arith.constant 0 : index
    %16 = vector.load %arg7[%c0_13, %c0_14] : memref<16x16xbf16, #tpu.memory_space<vmem>>, vector<16x16xbf16>
    %cst_15 = arith.constant dense<0.000000e+00> : vector<16x128xf32>
    %17 = tpu.matmul %16, %14, %cst_15 {dimension_numbers = #tpu.dot_dimension_numbers<[1], [0], [0], [1], [0, 0, 1, 1], [], []>} : vector<16x16xbf16>, vector<16x128xbf16>, vector<16x128xf32> -> vector<16x128xf32>
    %c0_16 = arith.constant 0 : index
    %c0_17 = arith.constant 0 : index
    %18 = vector.load %arg8[%c0_16, %c0_17] : memref<16x1xf32, #tpu.memory_space<vmem>>, vector<16x1xf32>
    %19 = vector.broadcast %18 : vector<16x1xf32> to vector<16x128xf32>
    %20 = arith.addf %17, %19 : vector<16x128xf32>
    %cst_18 = arith.constant 0.000000e+00 : f32
    %21 = vector.broadcast %cst_18 : f32 to vector<16x128xf32>
    %22 = arith.maximumf %20, %21 : vector<16x128xf32>
    %23 = arith.truncf %22 : vector<16x128xf32> to vector<16x128xbf16>
    %c0_19 = arith.constant 0 : index
    %c0_20 = arith.constant 0 : index
    %24 = vector.load %arg9[%c0_19, %c0_20] : memref<32x16xbf16, #tpu.memory_space<vmem>>, vector<32x16xbf16>
    %cst_21 = arith.constant dense<0.000000e+00> : vector<8x16xf32>
    %25 = tpu.matmul %5, %24, %cst_21 {dimension_numbers = #tpu.dot_dimension_numbers<[1], [0], [0], [1], [0, 0, 1, 1], [], []>} : vector<8x32xbf16>, vector<32x16xbf16>, vector<8x16xf32> -> vector<8x16xf32>
    %c0_22 = arith.constant 0 : index
    %c0_23 = arith.constant 0 : index
    %26 = vector.load %arg10[%c0_22, %c0_23] : memref<1x16xf32, #tpu.memory_space<vmem>>, vector<1x16xf32>
    %27 = vector.broadcast %26 : vector<1x16xf32> to vector<8x16xf32>
    %28 = arith.addf %25, %27 : vector<8x16xf32>
    %cst_24 = arith.constant 0.000000e+00 : f32
    %29 = vector.broadcast %cst_24 : f32 to vector<8x16xf32>
    %30 = arith.maximumf %28, %29 : vector<8x16xf32>
    %31 = arith.truncf %30 : vector<8x16xf32> to vector<8x16xbf16>
    %c0_25 = arith.constant 0 : index
    %c0_26 = arith.constant 0 : index
    %32 = vector.load %arg11[%c0_25, %c0_26] : memref<16x16xbf16, #tpu.memory_space<vmem>>, vector<16x16xbf16>
    %cst_27 = arith.constant dense<0.000000e+00> : vector<8x16xf32>
    %33 = tpu.matmul %31, %32, %cst_27 {dimension_numbers = #tpu.dot_dimension_numbers<[1], [0], [0], [1], [0, 0, 1, 1], [], []>} : vector<8x16xbf16>, vector<16x16xbf16>, vector<8x16xf32> -> vector<8x16xf32>
    %c0_28 = arith.constant 0 : index
    %c0_29 = arith.constant 0 : index
    %34 = vector.load %arg12[%c0_28, %c0_29] : memref<1x16xf32, #tpu.memory_space<vmem>>, vector<1x16xf32>
    %35 = vector.broadcast %34 : vector<1x16xf32> to vector<8x16xf32>
    %36 = arith.addf %33, %35 : vector<8x16xf32>
    %cst_30 = arith.constant 0.000000e+00 : f32
    %37 = vector.broadcast %cst_30 : f32 to vector<8x16xf32>
    %38 = arith.maximumf %36, %37 : vector<8x16xf32>
    %39 = arith.truncf %38 : vector<8x16xf32> to vector<8x16xbf16>
    %c0_31 = arith.constant 0 : index
    %c0_32 = arith.constant 0 : index
    %40 = vector.load %arg13[%c0_31, %c0_32] : memref<16x32xbf16, #tpu.memory_space<vmem>>, vector<16x32xbf16>
    %cst_33 = arith.constant dense<0.000000e+00> : vector<16x8xf32>
    %41 = tpu.matmul %40, %3, %cst_33 {dimension_numbers = #tpu.dot_dimension_numbers<[1], [0], [0], [1], [0, 0, 1, 1], [], []>} : vector<16x32xbf16>, vector<32x8xbf16>, vector<16x8xf32> -> vector<16x8xf32>
    %c0_34 = arith.constant 0 : index
    %c0_35 = arith.constant 0 : index
    %42 = vector.load %arg14[%c0_34, %c0_35] : memref<16x1xf32, #tpu.memory_space<vmem>>, vector<16x1xf32>
    %43 = vector.broadcast %42 : vector<16x1xf32> to vector<16x8xf32>
    %44 = arith.addf %41, %43 : vector<16x8xf32>
    %cst_36 = arith.constant 0.000000e+00 : f32
    %45 = vector.broadcast %cst_36 : f32 to vector<16x8xf32>
    %46 = arith.maximumf %44, %45 : vector<16x8xf32>
    %47 = arith.truncf %46 : vector<16x8xf32> to vector<16x8xbf16>
    %cst_37 = arith.constant dense<0.000000e+00> : vector<8x128xf32>
    %48 = tpu.matmul %39, %23, %cst_37 {dimension_numbers = #tpu.dot_dimension_numbers<[1], [0], [0], [1], [0, 0, 1, 1], [], []>} : vector<8x16xbf16>, vector<16x128xbf16>, vector<8x128xf32> -> vector<8x128xf32>
    %cst_38 = arith.constant 2.500000e-01 : f32
    %49 = vector.broadcast %cst_38 : f32 to vector<8x128xf32>
    %50 = arith.mulf %48, %49 : vector<8x128xf32>
    %cst_39 = arith.constant dense<0xFF800000> : vector<128xf32>
    %51 = vector.multi_reduction <maximumf>, %50, %cst_39 [0] : vector<8x128xf32> to vector<128xf32>
    %52 = vector.shape_cast %51 : vector<128xf32> to vector<1x128xf32>
    %53 = vector.broadcast %52 : vector<1x128xf32> to vector<8x128xf32>
    %54 = arith.subf %50, %53 : vector<8x128xf32>
    %55 = math.exp %54 : vector<8x128xf32>
    %cst_40 = arith.constant dense<0.000000e+00> : vector<128xf32>
    %56 = vector.multi_reduction <add>, %55, %cst_40 [0] : vector<8x128xf32> to vector<128xf32>
    %57 = vector.shape_cast %56 : vector<128xf32> to vector<1x128xf32>
    %58 = tpu.reciprocal %57 {approx = true} : vector<1x128xf32> -> vector<1x128xf32>
    %59 = vector.broadcast %58 : vector<1x128xf32> to vector<8x128xf32>
    %60 = arith.mulf %55, %59 : vector<8x128xf32>
    %61 = arith.truncf %60 : vector<8x128xf32> to vector<8x128xbf16>
    %cst_41 = arith.constant dense<0.000000e+00> : vector<16x128xf32>
    %62 = tpu.matmul %47, %61, %cst_41 {dimension_numbers = #tpu.dot_dimension_numbers<[1], [0], [0], [1], [0, 0, 1, 1], [], []>} : vector<16x8xbf16>, vector<8x128xbf16>, vector<16x128xf32> -> vector<16x128xf32>
    %c0_42 = arith.constant 0 : index
    %c0_43 = arith.constant 0 : index
    %63 = vector.load %arg15[%c0_42, %c0_43] : memref<32x16xbf16, #tpu.memory_space<vmem>>, vector<32x16xbf16>
    %64 = arith.truncf %62 : vector<16x128xf32> to vector<16x128xbf16>
    %cst_44 = arith.constant dense<0.000000e+00> : vector<32x128xf32>
    %65 = tpu.matmul %63, %64, %cst_44 {dimension_numbers = #tpu.dot_dimension_numbers<[1], [0], [0], [1], [0, 0, 1, 1], [], []>} : vector<32x16xbf16>, vector<16x128xbf16>, vector<32x128xf32> -> vector<32x128xf32>
    %c0_45 = arith.constant 0 : index
    %c0_46 = arith.constant 0 : index
    %66 = vector.load %arg16[%c0_45, %c0_46] : memref<32x1xf32, #tpu.memory_space<vmem>>, vector<32x1xf32>
    %67 = vector.broadcast %66 : vector<32x1xf32> to vector<32x128xf32>
    %68 = arith.addf %65, %67 : vector<32x128xf32>
    %cst_47 = arith.constant 0.000000e+00 : f32
    %69 = vector.broadcast %cst_47 : f32 to vector<32x128xf32>
    %70 = arith.maximumf %68, %69 : vector<32x128xf32>
    %c0_48 = arith.constant 0 : index
    %c0_49 = arith.constant 0 : index
    %71 = vector.load %arg17[%c0_48, %c0_49] : memref<32x32xbf16, #tpu.memory_space<vmem>>, vector<32x32xbf16>
    %72 = arith.truncf %70 : vector<32x128xf32> to vector<32x128xbf16>
    %cst_50 = arith.constant dense<0.000000e+00> : vector<32x128xf32>
    %73 = tpu.matmul %71, %72, %cst_50 {dimension_numbers = #tpu.dot_dimension_numbers<[1], [0], [0], [1], [0, 0, 1, 1], [], []>} : vector<32x32xbf16>, vector<32x128xbf16>, vector<32x128xf32> -> vector<32x128xf32>
    %74 = arith.addf %73, %15 : vector<32x128xf32>
    %c0_51 = arith.constant 0 : index
    %c0_52 = arith.constant 0 : index
    %75 = vector.load %arg18[%c0_51, %c0_52] : memref<32x1xf32, #tpu.memory_space<vmem>>, vector<32x1xf32>
    %76 = vector.broadcast %75 : vector<32x1xf32> to vector<32x128xf32>
    %77 = arith.addf %74, %76 : vector<32x128xf32>
    %cst_53 = arith.constant 0.000000e+00 : f32
    %78 = vector.broadcast %cst_53 : f32 to vector<32x128xf32>
    %79 = arith.maximumf %77, %78 : vector<32x128xf32>
    %c0_54 = arith.constant 0 : index
    %c0_55 = arith.constant 0 : index
    %c0_56 = arith.constant 0 : index
    %80 = vector.load %arg19[%c0_54, %c0_55, %c0_56] : memref<1x32x128xf32, #tpu.memory_space<vmem>>, vector<1x32x128xf32>
    %81 = vector.shape_cast %80 : vector<1x32x128xf32> to vector<32x128xf32>
    %82 = vector.shape_cast %79 : vector<32x128xf32> to vector<1x32x128xf32>
    tpu.vector_store %arg19[%c0_54, %c0_55, %c0_56], %82 {strides = array<i32>} : memref<1x32x128xf32, #tpu.memory_space<vmem>>, vector<1x32x128xf32>,
    return
  }
  func.func @transform_0(%arg0: i32, %arg1: i32) -> (i32, i32, i32) {
    %c0_i32 = arith.constant 0 : i32
    %c0_i32_0 = arith.constant 0 : i32
    return %arg0, %c0_i32, %arg1 : i32, i32, i32
  }
  func.func @transform_1(%arg0: i32, %arg1: i32) -> (i32, i32, i32) {
    %c0_i32 = arith.constant 0 : i32
    %c0_i32_0 = arith.constant 0 : i32
    %c0_i32_1 = arith.constant 0 : i32
    return %arg0, %c0_i32, %c0_i32_0 : i32, i32, i32
  }
  func.func @transform_2(%arg0: i32, %arg1: i32) -> (i32, i32, i32) {
    %c0_i32 = arith.constant 0 : i32
    %c0_i32_0 = arith.constant 0 : i32
    %c0_i32_1 = arith.constant 0 : i32
    return %arg0, %c0_i32, %c0_i32_0 : i32, i32, i32
  }
  func.func @transform_3(%arg0: i32, %arg1: i32) -> (i32, i32) {
    %c0_i32 = arith.constant 0 : i32
    %c0_i32_0 = arith.constant 0 : i32
    %c0_i32_1 = arith.constant 0 : i32
    return %c0_i32, %c0_i32_0 : i32, i32
  }
  func.func @transform_4(%arg0: i32, %arg1: i32) -> (i32, i32) {
    %c0_i32 = arith.constant 0 : i32
    %c0_i32_0 = arith.constant 0 : i32
    %c0_i32_1 = arith.constant 0 : i32
    return %c0_i32, %c0_i32_0 : i32, i32
  }
  func.func @transform_5(%arg0: i32, %arg1: i32) -> (i32, i32) {
    %c0_i32 = arith.constant 0 : i32
    %c0_i32_0 = arith.constant 0 : i32
    %c0_i32_1 = arith.constant 0 : i32
    return %c0_i32, %c0_i32_0 : i32, i32
  }
  func.func @transform_6(%arg0: i32, %arg1: i32) -> (i32, i32) {
    %c0_i32 = arith.constant 0 : i32
    %c0_i32_0 = arith.constant 0 : i32
    %c0_i32_1 = arith.constant 0 : i32
    return %c0_i32, %c0_i32_0 : i32, i32
  }
  func.func @transform_7(%arg0: i32, %arg1: i32) -> (i32, i32) {
    %c0_i32 = arith.constant 0 : i32
    %c0_i32_0 = arith.constant 0 : i32
    %c0_i32_1 = arith.constant 0 : i32
    return %c0_i32, %c0_i32_0 : i32, i32
  }
  func.func @transform_8(%arg0: i32, %arg1: i32) -> (i32, i32) {
    %c0_i32 = arith.constant 0 : i32
    %c0_i32_0 = arith.constant 0 : i32
    %c0_i32_1 = arith.constant 0 : i32
    return %c0_i32, %c0_i32_0 : i32, i32
  }
  func.func @transform_9(%arg0: i32, %arg1: i32) -> (i32, i32) {
    %c0_i32 = arith.constant 0 : i32
    %c0_i32_0 = arith.constant 0 : i32
    %c0_i32_1 = arith.constant 0 : i32
    return %c0_i32, %c0_i32_0 : i32, i32
  }
  func.func @transform_10(%arg0: i32, %arg1: i32) -> (i32, i32) {
    %c0_i32 = arith.constant 0 : i32
    %c0_i32_0 = arith.constant 0 : i32
    %c0_i32_1 = arith.constant 0 : i32
    return %c0_i32, %c0_i32_0 : i32, i32
  }
  func.func @transform_11(%arg0: i32, %arg1: i32) -> (i32, i32) {
    %c0_i32 = arith.constant 0 : i32
    %c0_i32_0 = arith.constant 0 : i32
    %c0_i32_1 = arith.constant 0 : i32
    return %c0_i32, %c0_i32_0 : i32, i32
  }
  func.func @transform_12(%arg0: i32, %arg1: i32) -> (i32, i32) {
    %c0_i32 = arith.constant 0 : i32
    %c0_i32_0 = arith.constant 0 : i32
    %c0_i32_1 = arith.constant 0 : i32
    return %c0_i32, %c0_i32_0 : i32, i32
  }
  func.func @transform_13(%arg0: i32, %arg1: i32) -> (i32, i32) {
    %c0_i32 = arith.constant 0 : i32
    %c0_i32_0 = arith.constant 0 : i32
    %c0_i32_1 = arith.constant 0 : i32
    return %c0_i32, %c0_i32_0 : i32, i32
  }
  func.func @transform_14(%arg0: i32, %arg1: i32) -> (i32, i32) {
    %c0_i32 = arith.constant 0 : i32
    %c0_i32_0 = arith.constant 0 : i32
    %c0_i32_1 = arith.constant 0 : i32
    return %c0_i32, %c0_i32_0 : i32, i32
  }
  func.func @transform_15(%arg0: i32, %arg1: i32) -> (i32, i32) {
    %c0_i32 = arith.constant 0 : i32
    %c0_i32_0 = arith.constant 0 : i32
    %c0_i32_1 = arith.constant 0 : i32
    return %c0_i32, %c0_i32_0 : i32, i32
  }
  func.func @transform_16(%arg0: i32, %arg1: i32) -> (i32, i32) {
    %c0_i32 = arith.constant 0 : i32
    %c0_i32_0 = arith.constant 0 : i32
    %c0_i32_1 = arith.constant 0 : i32
    return %c0_i32, %c0_i32_0 : i32, i32
  }
  func.func @transform_17(%arg0: i32, %arg1: i32) -> (i32, i32, i32) {
    %c0_i32 = arith.constant 0 : i32
    %c0_i32_0 = arith.constant 0 : i32
    return %arg0, %c0_i32, %arg1 : i32, i32, i32
  }
}

</mosaic_0001>

<llo_original>
// kernel: tpu_custom_call.1
$region0: #{tpu_custom_call.1}
  #allocation0 [shape = 'u32[]', space=smem, size = 0x4, offset = 0x4, fixed_abs, tag = 'smem constant byte address 0x4 - core index']
  #allocation1 [shape = 'u32[144,128]{1,0:T(1,128)}', space=vmem, size = 0x12000, scoped, tag = 'internal scratch']
  %s0 = inlined_call_operand.vmem [shape: bf16[2,32,256], index: 0, kind: input, shape index: {}]
  %s1 = inlined_call_operand.vmem [shape: bf16[2,32,8], index: 1, kind: input, shape index: {}]
  %s2 = inlined_call_operand.vmem [shape: bf16[2,8,32], index: 2, kind: input, shape index: {}]
  %s3 = inlined_call_operand.vmem [shape: bf16[48,32], index: 3, kind: input, shape index: {}]
  %s4 = inlined_call_operand.vmem [shape: f32[16,1], index: 4, kind: input, shape index: {}]
  %s5 = inlined_call_operand.vmem [shape: bf16[16,16], index: 5, kind: input, shape index: {}]
  %s6 = inlined_call_operand.vmem [shape: f32[16,1], index: 6, kind: input, shape index: {}]
  %s7 = inlined_call_operand.vmem [shape: bf16[32,16], index: 7, kind: input, shape index: {}]
  %s8 = inlined_call_operand.vmem [shape: f32[1,16], index: 8, kind: input, shape index: {}]
  %s9 = inlined_call_operand.vmem [shape: bf16[16,16], index: 9, kind: input, shape index: {}]
  %s10 = inlined_call_operand.vmem [shape: f32[1,16], index: 10, kind: input, shape index: {}]
  %s11 = inlined_call_operand.vmem [shape: bf16[16,32], index: 11, kind: input, shape index: {}]
  %s12 = inlined_call_operand.vmem [shape: f32[16,1], index: 12, kind: input, shape index: {}]
  %s13 = inlined_call_operand.vmem [shape: bf16[32,16], index: 13, kind: input, shape index: {}]
  %s14 = inlined_call_operand.vmem [shape: f32[32,1], index: 14, kind: input, shape index: {}]
  %s15 = inlined_call_operand.vmem [shape: bf16[32,32], index: 15, kind: input, shape index: {}]
  %s16 = inlined_call_operand.vmem [shape: f32[32,1], index: 16, kind: input, shape index: {}]
  %s17 = inlined_call_operand.hbm [shape: f32[2,32,256], index: 17, kind: output, shape index: {}]
  %s18 = sld [smem:[#allocation0]]
  $region142: #{tpu_custom_call.1} parent=0
    _
  %s20 = ssub.s32 1, %s18
  %s21 = scalar_select 0, %s20, %s18
  $region1: #{tpu_custom_call.1} parent=0
    #allocation2 [shape = 'u8[16384]{0}', space=vmem, size = 0x4000, scoped, tag = 'input window, operand 0']
    #allocation3 [shape = 'u8[32768]{0}', space=vmem, size = 0x8000, scoped, tag = 'output window, operand 0']
    #allocation4 [shape = 's32[2]{0}', space=sflag, size = 0x8, scoped, tag = 'scoped memory for tpu_custom_call.1']
    %22 = vsyncpa [#allocation4], 0
    %s23 = scalar_lea.sflag [#allocation4], 1
    %24 = vsyncpa %s23, 0
    loop: start=0, step=1, limit=6
    $region2: #{tpu_custom_call.1} parent=1 // loop_pre_header
      _
    $region3: #{tpu_custom_call.1} parent=1 // loop_header
      %s26 = sphi 0, %s30
      %p27 = scmp.ge.s32.totalorder %s26, 6
      %s33 = sphi 0, %s45
      %s34 = sphi 0, %s41
      %s35 = sphi 0, %s33
      %s36 = sphi 0, %s34
      %s37 = sphi 0, %s35
      %s38 = sphi 0, %s36
      %s50 = sphi 0, %s52
      %s53 = sphi 0, %s50
      %s54 = sphi 0, %s53
      %s70 = sphi 0, %s54
      %s76 = sphi 0, %s78
      %s79 = sphi 0, %s76
      %s80 = sphi 0, %s79
      %s96 = sphi 0, %s80
      %s102 = sphi 0, %s104
      %s105 = sphi 0, %s102
      %s106 = sphi 0, %s105
      %s122 = sphi 0, %s106
      %s126 = sphi 0, %s126
      %s128 = sphi 0, %s126
      %s129 = sphi 0, %s128
      %s143 = sphi 0, %s129
      %s147 = sphi 0, %s147
      %s149 = sphi 0, %s147
      %s150 = sphi 0, %s149
      %s164 = sphi 0, %s150
      %s168 = sphi 0, %s168
      %s170 = sphi 0, %s168
      %s171 = sphi 0, %s170
      %s185 = sphi 0, %s171
      %s189 = sphi 0, %s189
      %s191 = sphi 0, %s189
      %s192 = sphi 0, %s191
      %s206 = sphi 0, %s192
      %s210 = sphi 0, %s210
      %s212 = sphi 0, %s210
      %s213 = sphi 0, %s212
      %s227 = sphi 0, %s213
      %s231 = sphi 0, %s231
      %s233 = sphi 0, %s231
      %s234 = sphi 0, %s233
      %s248 = sphi 0, %s234
      %s252 = sphi 0, %s252
      %s254 = sphi 0, %s252
      %s255 = sphi 0, %s254
      %s269 = sphi 0, %s255
      %s273 = sphi 0, %s273
      %s275 = sphi 0, %s273
      %s276 = sphi 0, %s275
      %s290 = sphi 0, %s276
      %s294 = sphi 0, %s294
      %s296 = sphi 0, %s294
      %s297 = sphi 0, %s296
      %s311 = sphi 0, %s297
      %s315 = sphi 0, %s315
      %s317 = sphi 0, %s315
      %s318 = sphi 0, %s317
      %s332 = sphi 0, %s318
      %s336 = sphi 0, %s336
      %s338 = sphi 0, %s336
      %s339 = sphi 0, %s338
      %s353 = sphi 0, %s339
      %s357 = sphi 0, %s357
      %s359 = sphi 0, %s357
      %s360 = sphi 0, %s359
      %s374 = sphi 0, %s360
      %s378 = sphi 0, %s378
      %s380 = sphi 0, %s378
      %s381 = sphi 0, %s380
      %s395 = sphi 0, %s381
      %s399 = sphi 0, %s399
      %s401 = sphi 0, %s399
      %s402 = sphi 0, %s401
      %s416 = sphi 0, %s402
      %s424 = sphi 0, %s426
      %s427 = sphi 0, %s424
      %s428 = sphi 0, %s427
      %s444 = sphi 0, %s428
    $region4: #{tpu_custom_call.1} parent=1 // loop_header_branch
      %29 = sbr.rel (%p27) target = $region8
    $region5: #{tpu_custom_call.1} parent=1 // loop_body
      %s31 = ssub.s32 %s26, 1
      %s32 = ssub.s32 %s26, 2
      %s39 = sadd.s32 1, %s34
      %p40 = scmp.ge.s32.totalorder %s39, 2
      %s41 = scalar_select %p40, 0, %s39
      %s42 = sadd.s32 1, %s33
      %s43 = scalar_select %p40, %s42, %s33
      %p44 = scmp.ge.s32.totalorder %s43, 2
      %s45 = scalar_select %p44, 0, %s43
      %s46 = ssub.s32 %s33, %s45
      %s47 = ssub.s32 %s34, %s41
      %s48 = sor.u32 %s46, %s47
      %p49 = scmp.eq.s32.totalorder %s48, 0
      %s51 = sadd.s32 %s50, 1
      %s52 = scalar_select %p49, %s50, %s51
      %p55 = pneg %p49
      %p56 = scmp.eq.s32.totalorder %s26, 3
      %p57 = por %p55, %p56
      %p58 = scmp.ne.s32.totalorder %s50, %s53
      %p59 = scmp.eq.s32.totalorder %s26, 0
      %p60 = por %p58, %p59
      %p61 = scmp.ne.s32.totalorder %s50, %s53
      %p62 = scmp.eq.s32.totalorder %s31, 3
      %p63 = por %p61, %p62
      %p64 = scmp.ne.s32.totalorder %s53, %s54
      %p65 = scmp.eq.s32.totalorder %s31, 0
      %p66 = por %p64, %p65
      %p67 = scmp.ne.s32.totalorder %s53, %s54
      %p68 = scmp.eq.s32.totalorder %s32, 3
      %p69 = por %p67, %p68
      %p71 = scmp.ne.s32.totalorder %s54, %s70
      %p72 = scmp.eq.s32.totalorder %s32, 0
      %p73 = por %p71, %p72
      %s74 = ssub.s32 %s33, %s45
      %p75 = scmp.eq.s32.totalorder %s74, 0
      %s77 = sadd.s32 %s76, 1
      %s78 = scalar_select %p75, %s76, %s77
      %p81 = pneg %p75
      %p82 = scmp.eq.s32.totalorder %s26, 3
      %p83 = por %p81, %p82
      %p84 = scmp.ne.s32.totalorder %s76, %s79
      %p85 = scmp.eq.s32.totalorder %s26, 0
      %p86 = por %p84, %p85
      %p87 = scmp.ne.s32.totalorder %s76, %s79
      %p88 = scmp.eq.s32.totalorder %s31, 3
      %p89 = por %p87, %p88
      %p90 = scmp.ne.s32.totalorder %s79, %s80
      %p91 = scmp.eq.s32.totalorder %s31, 0
      %p92 = por %p90, %p91
      %p93 = scmp.ne.s32.totalorder %s79, %s80
      %p94 = scmp.eq.s32.totalorder %s32, 3
      %p95 = por %p93, %p94
      %p97 = scmp.ne.s32.totalorder %s80, %s96
      %p98 = scmp.eq.s32.totalorder %s32, 0
      %p99 = por %p97, %p98
      %s100 = ssub.s32 %s33, %s45
      %p101 = scmp.eq.s32.totalorder %s100, 0
      %s103 = sadd.s32 %s102, 1
      %s104 = scalar_select %p101, %s102, %s103
      %p107 = pneg %p101
      %p108 = scmp.eq.s32.totalorder %s26, 3
      %p109 = por %p107, %p108
      %p110 = scmp.ne.s32.totalorder %s102, %s105
      %p111 = scmp.eq.s32.totalorder %s26, 0
      %p112 = por %p110, %p111
      %p113 = scmp.ne.s32.totalorder %s102, %s105
      %p114 = scmp.eq.s32.totalorder %s31, 3
      %p115 = por %p113, %p114
      %p116 = scmp.ne.s32.totalorder %s105, %s106
      %p117 = scmp.eq.s32.totalorder %s31, 0
      %p118 = por %p116, %p117
      %p119 = scmp.ne.s32.totalorder %s105, %s106
      %p120 = scmp.eq.s32.totalorder %s32, 3
      %p121 = por %p119, %p120
      %p123 = scmp.ne.s32.totalorder %s106, %s122
      %p124 = scmp.eq.s32.totalorder %s32, 0
      %p125 = por %p123, %p124
      %s127 = sadd.s32 %s126, 1
      %p130 = scmp.eq.s32.totalorder %s26, 3
      %p131 = scmp.ne.s32.totalorder %s126, %s128
      %p132 = scmp.eq.s32.totalorder %s26, 0
      %p133 = por %p131, %p132
      %p134 = scmp.ne.s32.totalorder %s126, %s128
      %p135 = scmp.eq.s32.totalorder %s31, 3
      %p136 = por %p134, %p135
      %p137 = scmp.ne.s32.totalorder %s128, %s129
      %p138 = scmp.eq.s32.totalorder %s31, 0
      %p139 = por %p137, %p138
      %p140 = scmp.ne.s32.totalorder %s128, %s129
      %p141 = scmp.eq.s32.totalorder %s32, 3
      %p142 = por %p140, %p141
      %p144 = scmp.ne.s32.totalorder %s129, %s143
      %p145 = scmp.eq.s32.totalorder %s32, 0
      %p146 = por %p144, %p145
      %s148 = sadd.s32 %s147, 1
      %p151 = scmp.eq.s32.totalorder %s26, 3
      %p152 = scmp.ne.s32.totalorder %s147, %s149
      %p153 = scmp.eq.s32.totalorder %s26, 0
      %p154 = por %p152, %p153
      %p155 = scmp.ne.s32.totalorder %s147, %s149
      %p156 = scmp.eq.s32.totalorder %s31, 3
      %p157 = por %p155, %p156
      %p158 = scmp.ne.s32.totalorder %s149, %s150
      %p159 = scmp.eq.s32.totalorder %s31, 0
      %p160 = por %p158, %p159
      %p161 = scmp.ne.s32.totalorder %s149, %s150
      %p162 = scmp.eq.s32.totalorder %s32, 3
      %p163 = por %p161, %p162
      %p165 = scmp.ne.s32.totalorder %s150, %s164
      %p166 = scmp.eq.s32.totalorder %s32, 0
      %p167 = por %p165, %p166
      %s169 = sadd.s32 %s168, 1
      %p172 = scmp.eq.s32.totalorder %s26, 3
      %p173 = scmp.ne.s32.totalorder %s168, %s170
      %p174 = scmp.eq.s32.totalorder %s26, 0
      %p175 = por %p173, %p174
      %p176 = scmp.ne.s32.totalorder %s168, %s170
      %p177 = scmp.eq.s32.totalorder %s31, 3
      %p178 = por %p176, %p177
      %p179 = scmp.ne.s32.totalorder %s170, %s171
      %p180 = scmp.eq.s32.totalorder %s31, 0
      %p181 = por %p179, %p180
      %p182 = scmp.ne.s32.totalorder %s170, %s171
      %p183 = scmp.eq.s32.totalorder %s32, 3
      %p184 = por %p182, %p183
      %p186 = scmp.ne.s32.totalorder %s171, %s185
      %p187 = scmp.eq.s32.totalorder %s32, 0
      %p188 = por %p186, %p187
      %s190 = sadd.s32 %s189, 1
      %p193 = scmp.eq.s32.totalorder %s26, 3
      %p194 = scmp.ne.s32.totalorder %s189, %s191
      %p195 = scmp.eq.s32.totalorder %s26, 0
      %p196 = por %p194, %p195
      %p197 = scmp.ne.s32.totalorder %s189, %s191
      %p198 = scmp.eq.s32.totalorder %s31, 3
      %p199 = por %p197, %p198
      %p200 = scmp.ne.s32.totalorder %s191, %s192
      %p201 = scmp.eq.s32.totalorder %s31, 0
      %p202 = por %p200, %p201
      %p203 = scmp.ne.s32.totalorder %s191, %s192
      %p204 = scmp.eq.s32.totalorder %s32, 3
      %p205 = por %p203, %p204
      %p207 = scmp.ne.s32.totalorder %s192, %s206
      %p208 = scmp.eq.s32.totalorder %s32, 0
      %p209 = por %p207, %p208
      %s211 = sadd.s32 %s210, 1
      %p214 = scmp.eq.s32.totalorder %s26, 3
      %p215 = scmp.ne.s32.totalorder %s210, %s212
      %p216 = scmp.eq.s32.totalorder %s26, 0
      %p217 = por %p215, %p216
      %p218 = scmp.ne.s32.totalorder %s210, %s212
      %p219 = scmp.eq.s32.totalorder %s31, 3
      %p220 = por %p218, %p219
      %p221 = scmp.ne.s32.totalorder %s212, %s213
      %p222 = scmp.eq.s32.totalorder %s31, 0
      %p223 = por %p221, %p222
      %p224 = scmp.ne.s32.totalorder %s212, %s213
      %p225 = scmp.eq.s32.totalorder %s32, 3
      %p226 = por %p224, %p225
      %p228 = scmp.ne.s32.totalorder %s213, %s227
      %p229 = scmp.eq.s32.totalorder %s32, 0
      %p230 = por %p228, %p229
      %s232 = sadd.s32 %s231, 1
      %p235 = scmp.eq.s32.totalorder %s26, 3
      %p236 = scmp.ne.s32.totalorder %s231, %s233
      %p237 = scmp.eq.s32.totalorder %s26, 0
      %p238 = por %p236, %p237
      %p239 = scmp.ne.s32.totalorder %s231, %s233
      %p240 = scmp.eq.s32.totalorder %s31, 3
      %p241 = por %p239, %p240
      %p242 = scmp.ne.s32.totalorder %s233, %s234
      %p243 = scmp.eq.s32.totalorder %s31, 0
      %p244 = por %p242, %p243
      %p245 = scmp.ne.s32.totalorder %s233, %s234
      %p246 = scmp.eq.s32.totalorder %s32, 3
      %p247 = por %p245, %p246
      %p249 = scmp.ne.s32.totalorder %s234, %s248
      %p250 = scmp.eq.s32.totalorder %s32, 0
      %p251 = por %p249, %p250
      %s253 = sadd.s32 %s252, 1
      %p256 = scmp.eq.s32.totalorder %s26, 3
      %p257 = scmp.ne.s32.totalorder %s252, %s254
      %p258 = scmp.eq.s32.totalorder %s26, 0
      %p259 = por %p257, %p258
      %p260 = scmp.ne.s32.totalorder %s252, %s254
      %p261 = scmp.eq.s32.totalorder %s31, 3
      %p262 = por %p260, %p261
      %p263 = scmp.ne.s32.totalorder %s254, %s255
      %p264 = scmp.eq.s32.totalorder %s31, 0
      %p265 = por %p263, %p264
      %p266 = scmp.ne.s32.totalorder %s254, %s255
      %p267 = scmp.eq.s32.totalorder %s32, 3
      %p268 = por %p266, %p267
      %p270 = scmp.ne.s32.totalorder %s255, %s269
      %p271 = scmp.eq.s32.totalorder %s32, 0
      %p272 = por %p270, %p271
      %s274 = sadd.s32 %s273, 1
      %p277 = scmp.eq.s32.totalorder %s26, 3
      %p278 = scmp.ne.s32.totalorder %s273, %s275
      %p279 = scmp.eq.s32.totalorder %s26, 0
      %p280 = por %p278, %p279
      %p281 = scmp.ne.s32.totalorder %s273, %s275
      %p282 = scmp.eq.s32.totalorder %s31, 3
      %p283 = por %p281, %p282
      %p284 = scmp.ne.s32.totalorder %s275, %s276
      %p285 = scmp.eq.s32.totalorder %s31, 0
      %p286 = por %p284, %p285
      %p287 = scmp.ne.s32.totalorder %s275, %s276
      %p288 = scmp.eq.s32.totalorder %s32, 3
      %p289 = por %p287, %p288
      %p291 = scmp.ne.s32.totalorder %s276, %s290
      %p292 = scmp.eq.s32.totalorder %s32, 0
      %p293 = por %p291, %p292
      %s295 = sadd.s32 %s294, 1
      %p298 = scmp.eq.s32.totalorder %s26, 3
      %p299 = scmp.ne.s32.totalorder %s294, %s296
      %p300 = scmp.eq.s32.totalorder %s26, 0
      %p301 = por %p299, %p300
      %p302 = scmp.ne.s32.totalorder %s294, %s296
      %p303 = scmp.eq.s32.totalorder %s31, 3
      %p304 = por %p302, %p303
      %p305 = scmp.ne.s32.totalorder %s296, %s297
      %p306 = scmp.eq.s32.totalorder %s31, 0
      %p307 = por %p305, %p306
      %p308 = scmp.ne.s32.totalorder %s296, %s297
      %p309 = scmp.eq.s32.totalorder %s32, 3
      %p310 = por %p308, %p309
      %p312 = scmp.ne.s32.totalorder %s297, %s311
      %p313 = scmp.eq.s32.totalorder %s32, 0
      %p314 = por %p312, %p313
      %s316 = sadd.s32 %s315, 1
      %p319 = scmp.eq.s32.totalorder %s26, 3
      %p320 = scmp.ne.s32.totalorder %s315, %s317
      %p321 = scmp.eq.s32.totalorder %s26, 0
      %p322 = por %p320, %p321
      %p323 = scmp.ne.s32.totalorder %s315, %s317
      %p324 = scmp.eq.s32.totalorder %s31, 3
      %p325 = por %p323, %p324
      %p326 = scmp.ne.s32.totalorder %s317, %s318
      %p327 = scmp.eq.s32.totalorder %s31, 0
      %p328 = por %p326, %p327
      %p329 = scmp.ne.s32.totalorder %s317, %s318
      %p330 = scmp.eq.s32.totalorder %s32, 3
      %p331 = por %p329, %p330
      %p333 = scmp.ne.s32.totalorder %s318, %s332
      %p334 = scmp.eq.s32.totalorder %s32, 0
      %p335 = por %p333, %p334
      %s337 = sadd.s32 %s336, 1
      %p340 = scmp.eq.s32.totalorder %s26, 3
      %p341 = scmp.ne.s32.totalorder %s336, %s338
      %p342 = scmp.eq.s32.totalorder %s26, 0
      %p343 = por %p341, %p342
      %p344 = scmp.ne.s32.totalorder %s336, %s338
      %p345 = scmp.eq.s32.totalorder %s31, 3
      %p346 = por %p344, %p345
      %p347 = scmp.ne.s32.totalorder %s338, %s339
      %p348 = scmp.eq.s32.totalorder %s31, 0
      %p349 = por %p347, %p348
      %p350 = scmp.ne.s32.totalorder %s338, %s339
      %p351 = scmp.eq.s32.totalorder %s32, 3
      %p352 = por %p350, %p351
      %p354 = scmp.ne.s32.totalorder %s339, %s353
      %p355 = scmp.eq.s32.totalorder %s32, 0
      %p356 = por %p354, %p355
      %s358 = sadd.s32 %s357, 1
      %p361 = scmp.eq.s32.totalorder %s26, 3
      %p362 = scmp.ne.s32.totalorder %s357, %s359
      %p363 = scmp.eq.s32.totalorder %s26, 0
      %p364 = por %p362, %p363
      %p365 = scmp.ne.s32.totalorder %s357, %s359
      %p366 = scmp.eq.s32.totalorder %s31, 3
      %p367 = por %p365, %p366
      %p368 = scmp.ne.s32.totalorder %s359, %s360
      %p369 = scmp.eq.s32.totalorder %s31, 0
      %p370 = por %p368, %p369
      %p371 = scmp.ne.s32.totalorder %s359, %s360
      %p372 = scmp.eq.s32.totalorder %s32, 3
      %p373 = por %p371, %p372
      %p375 = scmp.ne.s32.totalorder %s360, %s374
      %p376 = scmp.eq.s32.totalorder %s32, 0
      %p377 = por %p375, %p376
      %s379 = sadd.s32 %s378, 1
      %p382 = scmp.eq.s32.totalorder %s26, 3
      %p383 = scmp.ne.s32.totalorder %s378, %s380
      %p384 = scmp.eq.s32.totalorder %s26, 0
      %p385 = por %p383, %p384
      %p386 = scmp.ne.s32.totalorder %s378, %s380
      %p387 = scmp.eq.s32.totalorder %s31, 3
      %p388 = por %p386, %p387
      %p389 = scmp.ne.s32.totalorder %s380, %s381
      %p390 = scmp.eq.s32.totalorder %s31, 0
      %p391 = por %p389, %p390
      %p392 = scmp.ne.s32.totalorder %s380, %s381
      %p393 = scmp.eq.s32.totalorder %s32, 3
      %p394 = por %p392, %p393
      %p396 = scmp.ne.s32.totalorder %s381, %s395
      %p397 = scmp.eq.s32.totalorder %s32, 0
      %p398 = por %p396, %p397
      %s400 = sadd.s32 %s399, 1
      %p403 = scmp.eq.s32.totalorder %s26, 3
      %p404 = scmp.ne.s32.totalorder %s399, %s401
      %p405 = scmp.eq.s32.totalorder %s26, 0
      %p406 = por %p404, %p405
      %p407 = scmp.ne.s32.totalorder %s399, %s401
      %p408 = scmp.eq.s32.totalorder %s31, 3
      %p409 = por %p407, %p408
      %p410 = scmp.ne.s32.totalorder %s401, %s402
      %p411 = scmp.eq.s32.totalorder %s31, 0
      %p412 = por %p410, %p411
      %p413 = scmp.ne.s32.totalorder %s401, %s402
      %p414 = scmp.eq.s32.totalorder %s32, 3
      %p415 = por %p413, %p414
      %p417 = scmp.ne.s32.totalorder %s402, %s416
      %p418 = scmp.eq.s32.totalorder %s32, 0
      %p419 = por %p417, %p418
      %s420 = ssub.s32 %s33, %s45
      %s421 = ssub.s32 %s34, %s41
      %s422 = sor.u32 %s420, %s421
      %p423 = scmp.eq.s32.totalorder %s422, 0
      %s425 = sadd.s32 %s424, 1
      %s426 = scalar_select %p423, %s424, %s425
      %p429 = pneg %p423
      %p430 = scmp.eq.s32.totalorder %s26, 3
      %p431 = por %p429, %p430
      %p432 = scmp.ne.s32.totalorder %s424, %s427
      %p433 = scmp.eq.s32.totalorder %s26, 0
      %p434 = por %p432, %p433
      %p435 = scmp.ne.s32.totalorder %s424, %s427
      %p436 = scmp.eq.s32.totalorder %s31, 3
      %p437 = por %p435, %p436
      %p438 = scmp.ne.s32.totalorder %s427, %s428
      %p439 = scmp.eq.s32.totalorder %s31, 0
      %p440 = por %p438, %p439
      %p441 = scmp.ne.s32.totalorder %s427, %s428
      %p442 = scmp.eq.s32.totalorder %s32, 3
      %p443 = por %p441, %p442
      %p445 = scmp.ne.s32.totalorder %s428, %s444
      %p446 = scmp.eq.s32.totalorder %s32, 0
      %p447 = por %p445, %p446
      %p448 = scmp.le.s32.totalorder 1, %s26
      %p449 = scmp.lt.s32.totalorder %s26, 5
      %p450 = pnand %p448, %p449
      %p451 = pneg %p450
      // Predicated region
      $region9: #{tpu_custom_call.1} parent=5 // pred_check
        _
      $region10: #{tpu_custom_call.1} parent=5 // pred_check_branch
        %453 = sbr.rel (%p450) target = $region12
      $region11: #{tpu_custom_call.1} parent=5 // pred_region
        %s454 = ssub.s32 %s26, 1
        // Predicated region
        $region13: #{tpu_custom_call.1} parent=11 // pred_check
          %p455 = pneg %p139
        $region14: #{tpu_custom_call.1} parent=11 // pred_check_branch
          %457 = sbr.rel (%p455) target = $region16
        $region15: #{tpu_custom_call.1} parent=11 // pred_region
          _
        $region16: #{tpu_custom_call.1} parent=11 // pred_fallthru
          _
        // Predicated region
        $region17: #{tpu_custom_call.1} parent=11 // pred_check
          %p458 = pneg %p160
        $region18: #{tpu_custom_call.1} parent=11 // pred_check_branch
          %460 = sbr.rel (%p458) target = $region20
        $region19: #{tpu_custom_call.1} parent=11 // pred_region
          _
        $region20: #{tpu_custom_call.1} parent=11 // pred_fallthru
          _
        // Predicated region
        $region21: #{tpu_custom_call.1} parent=11 // pred_check
          %p461 = pneg %p181
        $region22: #{tpu_custom_call.1} parent=11 // pred_check_branch
          %463 = sbr.rel (%p461) target = $region24
        $region23: #{tpu_custom_call.1} parent=11 // pred_region
          _
        $region24: #{tpu_custom_call.1} parent=11 // pred_fallthru
          _
        // Predicated region
        $region25: #{tpu_custom_call.1} parent=11 // pred_check
          %p464 = pneg %p202
        $region26: #{tpu_custom_call.1} parent=11 // pred_check_branch
          %466 = sbr.rel (%p464) target = $region28
        $region27: #{tpu_custom_call.1} parent=11 // pred_region
          _
        $region28: #{tpu_custom_call.1} parent=11 // pred_fallthru
          _
        // Predicated region
        $region29: #{tpu_custom_call.1} parent=11 // pred_check
          %p467 = pneg %p223
        $region30: #{tpu_custom_call.1} parent=11 // pred_check_branch
          %469 = sbr.rel (%p467) target = $region32
        $region31: #{tpu_custom_call.1} parent=11 // pred_region
          _
        $region32: #{tpu_custom_call.1} parent=11 // pred_fallthru
          _
        // Predicated region
        $region33: #{tpu_custom_call.1} parent=11 // pred_check
          %p470 = pneg %p244
        $region34: #{tpu_custom_call.1} parent=11 // pred_check_branch
          %472 = sbr.rel (%p470) target = $region36
        $region35: #{tpu_custom_call.1} parent=11 // pred_region
          _
        $region36: #{tpu_custom_call.1} parent=11 // pred_fallthru
          _
        // Predicated region
        $region37: #{tpu_custom_call.1} parent=11 // pred_check
          %p473 = pneg %p265
        $region38: #{tpu_custom_call.1} parent=11 // pred_check_branch
          %475 = sbr.rel (%p473) target = $region40
        $region39: #{tpu_custom_call.1} parent=11 // pred_region
          _
        $region40: #{tpu_custom_call.1} parent=11 // pred_fallthru
          _
        // Predicated region
        $region41: #{tpu_custom_call.1} parent=11 // pred_check
          %p476 = pneg %p286
        $region42: #{tpu_custom_call.1} parent=11 // pred_check_branch
          %478 = sbr.rel (%p476) target = $region44
        $region43: #{tpu_custom_call.1} parent=11 // pred_region
          _
        $region44: #{tpu_custom_call.1} parent=11 // pred_fallthru
          _
        // Predicated region
        $region45: #{tpu_custom_call.1} parent=11 // pred_check
          %p479 = pneg %p307
        $region46: #{tpu_custom_call.1} parent=11 // pred_check_branch
          %481 = sbr.rel (%p479) target = $region48
        $region47: #{tpu_custom_call.1} parent=11 // pred_region
          _
        $region48: #{tpu_custom_call.1} parent=11 // pred_fallthru
          _
        // Predicated region
        $region49: #{tpu_custom_call.1} parent=11 // pred_check
          %p482 = pneg %p328
        $region50: #{tpu_custom_call.1} parent=11 // pred_check_branch
          %484 = sbr.rel (%p482) target = $region52
        $region51: #{tpu_custom_call.1} parent=11 // pred_region
          _
        $region52: #{tpu_custom_call.1} parent=11 // pred_fallthru
          _
        // Predicated region
        $region53: #{tpu_custom_call.1} parent=11 // pred_check
          %p485 = pneg %p349
        $region54: #{tpu_custom_call.1} parent=11 // pred_check_branch
          %487 = sbr.rel (%p485) target = $region56
        $region55: #{tpu_custom_call.1} parent=11 // pred_region
          _
        $region56: #{tpu_custom_call.1} parent=11 // pred_fallthru
          _
        // Predicated region
        $region57: #{tpu_custom_call.1} parent=11 // pred_check
          %p488 = pneg %p370
        $region58: #{tpu_custom_call.1} parent=11 // pred_check_branch
          %490 = sbr.rel (%p488) target = $region60
        $region59: #{tpu_custom_call.1} parent=11 // pred_region
          _
        $region60: #{tpu_custom_call.1} parent=11 // pred_fallthru
          _
        // Predicated region
        $region61: #{tpu_custom_call.1} parent=11 // pred_check
          %p491 = pneg %p391
        $region62: #{tpu_custom_call.1} parent=11 // pred_check_branch
          %493 = sbr.rel (%p491) target = $region64
        $region63: #{tpu_custom_call.1} parent=11 // pred_region
          _
        $region64: #{tpu_custom_call.1} parent=11 // pred_fallthru
          _
        // Predicated region
        $region65: #{tpu_custom_call.1} parent=11 // pred_check
          %p494 = pneg %p412
        $region66: #{tpu_custom_call.1} parent=11 // pred_check_branch
          %496 = sbr.rel (%p494) target = $region68
        $region67: #{tpu_custom_call.1} parent=11 // pred_region
          _
        $region68: #{tpu_custom_call.1} parent=11 // pred_fallthru
          _
      $region12: #{tpu_custom_call.1} parent=5 // pred_fallthru
        _
      %p497 = scmp.lt.s32.totalorder %s26, 4
      // Predicated region
      $region69: #{tpu_custom_call.1} parent=5 // pred_check
        %p498 = pneg %p497
      $region70: #{tpu_custom_call.1} parent=5 // pred_check_branch
        %500 = sbr.rel (%p498) target = $region72
      $region71: #{tpu_custom_call.1} parent=5 // pred_region
        // Predicated region
        $region73: #{tpu_custom_call.1} parent=71 // pred_check
          %p501 = pneg %p60
        $region74: #{tpu_custom_call.1} parent=71 // pred_check_branch
          %503 = sbr.rel (%p501) target = $region76
        $region75: #{tpu_custom_call.1} parent=71 // pred_region
          %s504 = sand.u32 %s50, 1
          %s505 = sand.u32 %s50, 1
          %s506 = smul.addr %s505, 16
          %s507 = scalar_lea.vmem [#allocation2], %s506
          %s508 = smul.addr %s33, 8
          %s509 = sadd.s32 %s34, %s508
          %s510 = smul.addr %s509, 4
          %s511 = scalar_lea.vmem %s0, %s510
          // Predicated region
          $region77: #{tpu_custom_call.1} parent=75 // pred_check
            _
          $region78: #{tpu_custom_call.1} parent=75 // pred_check_branch
            %513 = sbr.rel (0) target = $region80
          $region79: #{tpu_custom_call.1} parent=75 // pred_region
            // Predicated region
            $region81: #{tpu_custom_call.1} parent=79 // pred_check
              _
            $region82: #{tpu_custom_call.1} parent=79 // pred_check_branch
              %515 = sbr.rel target = $region84
            $region83: #{tpu_custom_call.1} parent=79 // pred_region
              // Predicated region
              $region96: #{tpu_custom_call.1} parent=83 // pred_check
                _
              $region97: #{tpu_custom_call.1} parent=83 // pred_check_branch
                %536 = sbr.rel (0) target = $region99
              $region98: #{tpu_custom_call.1} parent=83 // pred_region
                loop: start=0, step=1, limit=1
                $region100: #{tpu_custom_call.1} parent=98 // loop_pre_header
                  _
                $region101: #{tpu_custom_call.1} parent=98 // loop_header
                  %s538 = sphi 0, %s542
                  %p539 = scmp.ge.s32.totalorder %s538, 1
                  %s543 = sphi %s511, %s511
                  %s544 = sphi %s507, %s507
                $region102: #{tpu_custom_call.1} parent=98 // loop_header_branch
                  %541 = sbr.rel (%p539) target = $region106
                $region103: #{tpu_custom_call.1} parent=98 // loop_body
                  _
                $region104: #{tpu_custom_call.1} parent=98 // loop_footer
                  %s542 = sadd.s32 1, %s538
                $region105: #{tpu_custom_call.1} parent=98 // loop_footer_branch
                  %537 = sbr.rel target = $region101
                $region106: #{tpu_custom_call.1} parent=98 // loop_exit
                  _
                loop: start=0, step=1, limit=1
                $region107: #{tpu_custom_call.1} parent=98 // loop_pre_header
                  _
                $region108: #{tpu_custom_call.1} parent=98 // loop_header
                  %s547 = sphi 0, %s551
                  %p548 = scmp.ge.s32.totalorder %s547, 1
                  %s552 = sphi %s511, %s511
                  %s553 = sphi %s507, %s507
                $region109: #{tpu_custom_call.1} parent=98 // loop_header_branch
                  %550 = sbr.rel (%p548) target = $region113
                $region110: #{tpu_custom_call.1} parent=98 // loop_body
                  %v554 = vld [vmem:[%s552] sm:$0xf]
                  %555 = vst [vmem:[%s553] sm:$0xf] %v554
                  %v556 = vld [vmem:[%s552 + $0x8] sm:$0xf]
                  %557 = vst [vmem:[%s553 + $0x4] sm:$0xf] %v556
                  %v558 = vld [vmem:[%s552 + $0x10] sm:$0xf]
                  %559 = vst [vmem:[%s553 + $0x8] sm:$0xf] %v558
                  %v560 = vld [vmem:[%s552 + $0x18] sm:$0xf]
                  %561 = vst [vmem:[%s553 + $0xc] sm:$0xf] %v560
                $region111: #{tpu_custom_call.1} parent=98 // loop_footer
                  %s551 = sadd.s32 1, %s547
                $region112: #{tpu_custom_call.1} parent=98 // loop_footer_branch
                  %546 = sbr.rel target = $region108
                $region113: #{tpu_custom_call.1} parent=98 // loop_exit
                  _
              $region99: #{tpu_custom_call.1} parent=83 // pred_fallthru
                _
            $region84: #{tpu_custom_call.1} parent=79 // pred_fallthru
              _
            // Predicated region
            $region85: #{tpu_custom_call.1} parent=79 // pred_check
              _
            $region86: #{tpu_custom_call.1} parent=79 // pred_check_branch
              %517 = sbr.rel (0) target = $region88
            $region87: #{tpu_custom_call.1} parent=79 // pred_region
              loop: start=0, step=1, limit=1
              $region89: #{tpu_custom_call.1} parent=87 // loop_pre_header
                _
              $region90: #{tpu_custom_call.1} parent=87 // loop_header
                %s520 = sphi 0, %s524
                %p521 = scmp.ge.s32.totalorder %s520, 1
                %s525 = sphi %s511, %s511
                %s526 = sphi %s507, %s507
              $region91: #{tpu_custom_call.1} parent=87 // loop_header_branch
                %523 = sbr.rel (%p521) target = $region95
              $region92: #{tpu_custom_call.1} parent=87 // loop_body
                %v527 = vld [vmem:[%s525] sm:$0xf]
                %528 = vst [vmem:[%s526] sm:$0xf] %v527
                %v529 = vld [vmem:[%s525 + $0x8] sm:$0xf]
                %530 = vst [vmem:[%s526 + $0x4] sm:$0xf] %v529
                %v531 = vld [vmem:[%s525 + $0x10] sm:$0xf]
                %532 = vst [vmem:[%s526 + $0x8] sm:$0xf] %v531
                %v533 = vld [vmem:[%s525 + $0x18] sm:$0xf]
                %534 = vst [vmem:[%s526 + $0xc] sm:$0xf] %v533
              $region93: #{tpu_custom_call.1} parent=87 // loop_footer
                %s524 = sadd.s32 1, %s520
              $region94: #{tpu_custom_call.1} parent=87 // loop_footer_branch
                %519 = sbr.rel target = $region90
              $region95: #{tpu_custom_call.1} parent=87 // loop_exit
                _
            $region88: #{tpu_custom_call.1} parent=79 // pred_fallthru
              _
          $region80: #{tpu_custom_call.1} parent=75 // pred_fallthru
            _
          %562 = vnop
        $region76: #{tpu_custom_call.1} parent=71 // pred_fallthru
          _
        // Predicated region
        $region114: #{tpu_custom_call.1} parent=71 // pred_check
          %p563 = pneg %p86
        $region115: #{tpu_custom_call.1} parent=71 // pred_check_branch
          %565 = sbr.rel (%p563) target = $region117
        $region116: #{tpu_custom_call.1} parent=71 // pred_region
          %p566 = scmp.lt.s32.totalorder %s33, 1
          %s567 = scalar_select %p566, %s33, 1
          %s568 = smul.addr %s567, 4
          %s569 = smul.addr %s568, 4
          %s570 = scalar_lea.vmem %s1, %s569
        $region117: #{tpu_custom_call.1} parent=71 // pred_fallthru
          _
        // Predicated region
        $region118: #{tpu_custom_call.1} parent=71 // pred_check
          %p571 = pneg %p112
        $region119: #{tpu_custom_call.1} parent=71 // pred_check_branch
          %573 = sbr.rel (%p571) target = $region121
        $region120: #{tpu_custom_call.1} parent=71 // pred_region
          %p574 = scmp.lt.s32.totalorder %s33, 1
          %s575 = scalar_select %p574, %s33, 1
          %s576 = smul.addr %s575, 4
          %s577 = scalar_lea.vmem %s2, %s576
        $region121: #{tpu_custom_call.1} parent=71 // pred_fallthru
          _
      $region72: #{tpu_custom_call.1} parent=5 // pred_fallthru
        _
      %p578 = scmp.le.s32.totalorder 1, %s26
      %p579 = scmp.lt.s32.totalorder %s26, 5
      %p580 = pnand %p578, %p579
      %p581 = pneg %p580
      // Predicated region
      $region122: #{tpu_custom_call.1} parent=5 // pred_check
        _
      $region123: #{tpu_custom_call.1} parent=5 // pred_check_branch
        %583 = sbr.rel (%p580) target = $region125
      $region124: #{tpu_custom_call.1} parent=5 // pred_region
        %s584 = ssub.s32 %s26, 1
        %s585 = sand.u32 %s53, 1
        %s586 = sand.u32 %s53, 1
        %s587 = smul.addr %s586, 16
        %s588 = scalar_lea.vmem [#allocation2], %s587
        // Predicated region
        $region126: #{tpu_custom_call.1} parent=124 // pred_check
          %p589 = pneg %p66
        $region127: #{tpu_custom_call.1} parent=124 // pred_check_branch
          %591 = sbr.rel (%p589) target = $region129
        $region128: #{tpu_custom_call.1} parent=124 // pred_region
          _
        $region129: #{tpu_custom_call.1} parent=124 // pred_fallthru
          _
        %s592 = sand.u32 %s53, 1
        %s593 = sand.u32 %s53, 1
        %s594 = smul.addr %s593, 16
        %s595 = scalar_lea.vmem [#allocation2], %s594
        %p596 = pneg %p66
        %p597 = pneg %p63
        %p598 = scmp.lt.s32.totalorder %s35, 1
        %s599 = scalar_select %p598, %s35, 1
        %s600 = smul.addr %s599, 4
        %s601 = smul.addr %s600, 4
        %s602 = scalar_lea.vmem %s1, %s601
        %p603 = pneg %p92
        %p604 = pneg %p89
        %p605 = scmp.lt.s32.totalorder %s35, 1
        %s606 = scalar_select %p605, %s35, 1
        %s607 = smul.addr %s606, 4
        %s608 = scalar_lea.vmem %s2, %s607
        %p609 = pneg %p118
        %p610 = pneg %p115
        %p611 = pneg %p139
        %p612 = pneg %p136
        %p613 = pneg %p160
        %p614 = pneg %p157
        %p615 = pneg %p181
        %p616 = pneg %p178
        %p617 = pneg %p202
        %p618 = pneg %p199
        %p619 = pneg %p223
        %p620 = pneg %p220
        %p621 = pneg %p244
        %p622 = pneg %p241
        %p623 = pneg %p265
        %p624 = pneg %p262
        %p625 = pneg %p286
        %p626 = pneg %p283
        %p627 = pneg %p307
        %p628 = pneg %p304
        %p629 = pneg %p328
        %p630 = pneg %p325
        %p631 = pneg %p349
        %p632 = pneg %p346
        %p633 = pneg %p370
        %p634 = pneg %p367
        %p635 = pneg %p391
        %p636 = pneg %p388
        %p637 = pneg %p412
        %p638 = pneg %p409
        %p639 = pneg %p440
        %p640 = pneg %p437
        %s641 = sand.u32 %s427, 1
        %s642 = scalar_lea.sflag [#allocation4], %s641
        %s643 = sand.u32 %s427, 1
        %s644 = smul.addr %s643, 32
        %s645 = scalar_lea.vmem [#allocation3], %s644
        %p646 = scmp.lt.s32.totalorder %s35, 1
        %s647 = scalar_select %p646, %s35, 1
        %s648 = smul.addr %s647, 4
        %s649 = smul.addr %s648, 4
        %s650 = scalar_lea.vmem %s1, %s649
        %p651 = scmp.lt.s32.totalorder %s35, 1
        %s652 = scalar_select %p651, %s35, 1
        %s653 = smul.addr %s652, 4
        %s654 = scalar_lea.vmem %s2, %s653
        %v656 = vld [vmem:[%s588] sm:$0xf]
        %v657 = vld [vmem:[%s588 + $0x4] sm:$0xf]
        %v658 = vld [vmem:[%s588 + $0x8] sm:$0xf]
        %v659 = vld [vmem:[%s588 + $0xc] sm:$0xf]
        %v660 = vld [vmem:[%s650] sm:$0xf]
        %v661 = vld [vmem:[%s650 + $0x4] sm:$0xf]
        %v662 = vld [vmem:[%s650 + $0x8] sm:$0xf]
        %v663 = vld [vmem:[%s650 + $0xc] sm:$0xf]
        %v664 = vld [vmem:[%s654] sm:$0xf]
        %v665 = vld [vmem:[%s3] sm:$0xf]
        %v666 = vld [vmem:[%s3 + $0x4] sm:$0xf]
        %v667 = vld [vmem:[%s3 + $0x8] sm:$0xf]
        %v668 = vld [vmem:[%s3 + $0xc] sm:$0xf]
        %v669 = vld [vmem:[%s3 + $0x10] sm:$0xf]
        %v670 = vld [vmem:[%s3 + $0x14] sm:$0xf]
        %v677 = vunpack.c.l.b16 %v665
        %v678 = vunpack.c.l.b16 %v666
        %v679 = vunpack.c.l.b16 %v667
        %v680 = vunpack.c.l.b16 %v668
        %v681 = vunpack.c.l.b16 %v669
        %v682 = vunpack.c.l.b16 %v670
        %v683 = vpack.c.b16 %v678, %v677
        %v684 = vpack.c.b16 %v680, %v679
        %v685 = vpack.c.b16 %v682, %v681
        %v690 = vunpack.c.l.b16 %v656
        %v691 = vunpack.c.l.b16 %v657
        %v692 = vunpack.c.l.b16 %v658
        %v693 = vunpack.c.l.b16 %v659
        %v694 = vpack.c.b16 %v691, %v690
        %v695 = vpack.c.b16 %v693, %v692
        %vm698 = vcmask 261120
        %v700 = vsel %vm698, %v683, 0
        %v703 = vsel %vm698, %v684, 0
        %v706 = vsel %vm698, %v685, 0
        %708 = vmatprep.subr.bf16.mxu0 0
        %709 = vmatpush1.bf16.msra.mxu0 %v694
        %710 = vmatprep.subr.bf16.mxu0 0
        %711 = vmatpush1.bf16.msra.mxu0 %v695
        %712 = vmatprep.subr.bf16.mxu0 0
        %713 = vmatpush1.bf16.msra.mxu0 0
        %714 = vmatprep.subr.bf16.mxu0 0
        %715 = vmatpush1.bf16.msra.mxu0 0
        %716 = vmatprep.subr.bf16.mxu0 0
        %717 = vmatpush1.bf16.msra.mxu0 0
        %718 = vmatprep.subr.bf16.mxu0 0
        %719 = vmatpush1.bf16.msra.mxu0 0
        %720 = vmatprep.subr.bf16.mxu0 0
        %721 = vmatpush1.bf16.msra.mxu0 0
        %722 = vmatprep.subr.bf16.mxu0 0
        %723 = vmatpush1.bf16.msra.mxu0 0
        %724 = vmatprep.subr.bf16.mxu0 0
        %725 = vmatpush1.bf16.msra.mxu0 0
        %726 = vmatprep.subr.bf16.mxu0 0
        %727 = vmatpush1.bf16.msra.mxu0 0
        %728 = vmatprep.subr.bf16.mxu0 0
        %729 = vmatpush1.bf16.msra.mxu0 0
        %730 = vmatprep.subr.bf16.mxu0 0
        %731 = vmatpush1.bf16.msra.mxu0 0
        %732 = vmatprep.subr.bf16.mxu0 0
        %733 = vmatpush1.bf16.msra.mxu0 0
        %734 = vmatprep.subr.bf16.mxu0 0
        %735 = vmatpush1.bf16.msra.mxu0 0
        %736 = vmatprep.subr.bf16.mxu0 0
        %737 = vmatpush1.bf16.msra.mxu0 0
        %738 = vmatprep.subr.bf16.mxu0 0
        %739 = vmatpush1.bf16.msra.mxu0 0
        %740 = vmatprep.mubr.bf16.mxu0 0
        %741 = vmatmul.mubr.bf16.gmra.mrb[0].mxu0 %v700
        %v742 = vpop.f32.mrb[0].mxu0
        %v743 = vadd.f32 0.0, %v742
        %v744 = vpop.f32.mrb[0].mxu0
        %v745 = vpop.f32.mrb[0].mxu0
        %v746 = vadd.f32 0.0, %v745
        %v747 = vpop.f32.mrb[0].mxu0
        %748 = vmatprep.mubr.bf16.mxu0 0
        %749 = vmatmul.mubr.bf16.gmra.mrb[0].mxu0 %v703
        %v750 = vpop.f32.mrb[0].mxu0
        %v751 = vadd.f32 0.0, %v750
        %v752 = vpop.f32.mrb[0].mxu0
        %v753 = vpop.f32.mrb[0].mxu0
        %v754 = vadd.f32 0.0, %v753
        %v755 = vpop.f32.mrb[0].mxu0
        %756 = vmatprep.mubr.bf16.mxu0 0
        %757 = vmatmul.mubr.bf16.gmra.mrb[0].mxu0 %v706
        %v758 = vpop.f32.mrb[0].mxu0
        %v759 = vadd.f32 0.0, %v758
        %v760 = vpop.f32.mrb[0].mxu0
        %v761 = vpop.f32.mrb[0].mxu0
        %v762 = vadd.f32 0.0, %v761
        %v763 = vpop.f32.mrb[0].mxu0
        %764 = vdwg.mxu0
        %v765 = vld [vmem:[%s4] sm:$0xff]
        %v766 = vld [vmem:[%s4 + $0x8] sm:$0xff]
        %768 = vset.pattern.permute.xlu0 0
        %769 = vperm.xlu0 %768, %v765
        %v770 = vpop.permute.xlu0 %769
        %773 = vset.pattern.permute.xlu0 0
        %774 = vperm.xlu0 %773, %v766
        %v775 = vpop.permute.xlu0 %774
        %v777 = vadd.f32 %v743, %v770
        %v778 = vadd.f32 %v746, %v775
        %v779 = vmax.f32 %v777, 0.0
        %v780 = vmax.f32 %v778, 0.0
        %v781 = vpack.c.bf16 %v780, %v779
        %v782 = vld [vmem:[%s5] sm:$0xf]
        %v783 = vld [vmem:[%s5 + $0x4] sm:$0xf]
        %v784 = vld [vmem:[%s6] sm:$0xff]
        %v785 = vld [vmem:[%s6 + $0x8] sm:$0xff]
        %787 = vset.pattern.permute.xlu0 0
        %788 = vperm.xlu0 %787, %v784
        %v789 = vpop.permute.xlu0 %788
        %792 = vset.pattern.permute.xlu0 0
        %793 = vperm.xlu0 %792, %v785
        %v794 = vpop.permute.xlu0 %793
        %v798 = vunpack.c.l.b16 %v782
        %v799 = vunpack.c.l.b16 %v783
        %v800 = vpack.c.b16 %v799, %v798
        %vm801 = vcmask 130048
        %v803 = vsel %vm801, %v800, 0
        %805 = vmatprep.subr.bf16.mxu0 0
        %806 = vmatpush1.bf16.msra.mxu0 %v781
        %807 = vmatprep.subr.bf16.mxu0 0
        %808 = vmatpush1.bf16.msra.mxu0 0
        %809 = vmatprep.subr.bf16.mxu0 0
        %810 = vmatpush1.bf16.msra.mxu0 0
        %811 = vmatprep.subr.bf16.mxu0 0
        %812 = vmatpush1.bf16.msra.mxu0 0
        %813 = vmatprep.subr.bf16.mxu0 0
        %814 = vmatpush1.bf16.msra.mxu0 0
        %815 = vmatprep.subr.bf16.mxu0 0
        %816 = vmatpush1.bf16.msra.mxu0 0
        %817 = vmatprep.subr.bf16.mxu0 0
        %818 = vmatpush1.bf16.msra.mxu0 0
        %819 = vmatprep.subr.bf16.mxu0 0
        %820 = vmatpush1.bf16.msra.mxu0 0
        %821 = vmatprep.subr.bf16.mxu0 0
        %822 = vmatpush1.bf16.msra.mxu0 0
        %823 = vmatprep.subr.bf16.mxu0 0
        %824 = vmatpush1.bf16.msra.mxu0 0
        %825 = vmatprep.subr.bf16.mxu0 0
        %826 = vmatpush1.bf16.msra.mxu0 0
        %827 = vmatprep.subr.bf16.mxu0 0
        %828 = vmatpush1.bf16.msra.mxu0 0
        %829 = vmatprep.subr.bf16.mxu0 0
        %830 = vmatpush1.bf16.msra.mxu0 0
        %831 = vmatprep.subr.bf16.mxu0 0
        %832 = vmatpush1.bf16.msra.mxu0 0
        %833 = vmatprep.subr.bf16.mxu0 0
        %834 = vmatpush1.bf16.msra.mxu0 0
        %835 = vmatprep.subr.bf16.mxu0 0
        %836 = vmatpush1.bf16.msra.mxu0 0
        %837 = vmatprep.mubr.bf16.mxu0 0
        %838 = vmatmul.mubr.bf16.gmra.mrb[0].mxu0 %v803
        %v839 = vpop.f32.mrb[0].mxu0
        %v840 = vadd.f32 %v789, %v839
        %v841 = vpop.f32.mrb[0].mxu0
        %v842 = vpop.f32.mrb[0].mxu0
        %v843 = vadd.f32 %v794, %v842
        %v844 = vpop.f32.mrb[0].mxu0
        %845 = vdwg.mxu0
        %v846 = vmax.f32 %v840, 0.0
        %v847 = vmax.f32 %v843, 0.0
        %v848 = vpack.c.bf16 %v847, %v846
        %v849 = vld [vmem:[%s7] sm:$0xf]
        %v850 = vld [vmem:[%s7 + $0x4] sm:$0xf]
        %v851 = vld [vmem:[%s7 + $0x8] sm:$0xf]
        %v852 = vld [vmem:[%s7 + $0xc] sm:$0xf]
        %v853 = vld [vmem:[%s8] sm:$0x1]
        %v855 = vlaneseq
        %v856 = vshrl.u32 %v855, 7
        %v857 = vsub.s32 0, %v856
        %v858 = vrot.slane %v853, %v857
        %v864 = vunpack.c.l.b16 %v849
        %v865 = vunpack.c.l.b16 %v850
        %v866 = vunpack.c.l.b16 %v851
        %v867 = vunpack.c.l.b16 %v852
        %v868 = vpack.c.b16 %v865, %v864
        %v869 = vpack.c.b16 %v867, %v866
        %v873 = vsel %vm698, %v664, 0
        %875 = vmatprep.subr.bf16.mxu0 0
        %876 = vmatpush1.bf16.msra.mxu0 %v868
        %877 = vmatprep.subr.bf16.mxu0 0
        %878 = vmatpush1.bf16.msra.mxu0 %v869
        %879 = vmatprep.subr.bf16.mxu0 0
        %880 = vmatpush1.bf16.msra.mxu0 0
        %881 = vmatprep.subr.bf16.mxu0 0
        %882 = vmatpush1.bf16.msra.mxu0 0
        %883 = vmatprep.subr.bf16.mxu0 0
        %884 = vmatpush1.bf16.msra.mxu0 0
        %885 = vmatprep.subr.bf16.mxu0 0
        %886 = vmatpush1.bf16.msra.mxu0 0
        %887 = vmatprep.subr.bf16.mxu0 0
        %888 = vmatpush1.bf16.msra.mxu0 0
        %889 = vmatprep.subr.bf16.mxu0 0
        %890 = vmatpush1.bf16.msra.mxu0 0
        %891 = vmatprep.subr.bf16.mxu0 0
        %892 = vmatpush1.bf16.msra.mxu0 0
        %893 = vmatprep.subr.bf16.mxu0 0
        %894 = vmatpush1.bf16.msra.mxu0 0
        %895 = vmatprep.subr.bf16.mxu0 0
        %896 = vmatpush1.bf16.msra.mxu0 0
        %897 = vmatprep.subr.bf16.mxu0 0
        %898 = vmatpush1.bf16.msra.mxu0 0
        %899 = vmatprep.subr.bf16.mxu0 0
        %900 = vmatpush1.bf16.msra.mxu0 0
        %901 = vmatprep.subr.bf16.mxu0 0
        %902 = vmatpush1.bf16.msra.mxu0 0
        %903 = vmatprep.subr.bf16.mxu0 0
        %904 = vmatpush1.bf16.msra.mxu0 0
        %905 = vmatprep.subr.bf16.mxu0 0
        %906 = vmatpush1.bf16.msra.mxu0 0
        %907 = vmatprep.mubr.bf16.mxu0 0
        %908 = vmatmul.mubr.bf16.gmra.mrb[0].mxu0 %v873
        %v909 = vpop.f32.mrb[0].mxu0
        %v910 = vadd.f32 %v858, %v909
        %v911 = vpop.f32.mrb[0].mxu0
        %v912 = vpop.f32.mrb[0].mxu0
        %v913 = vpop.f32.mrb[0].mxu0
        %914 = vdwg.mxu0
        %v915 = vmax.f32 %v910, 0.0
        %v916 = vpack.c.bf16 %v915, %v915
        %v917 = vld [vmem:[%s9] sm:$0xf]
        %v918 = vld [vmem:[%s9 + $0x4] sm:$0xf]
        %v919 = vld [vmem:[%s10] sm:$0x1]
        %v921 = vlaneseq
        %v922 = vshrl.u32 %v921, 7
        %v923 = vsub.s32 0, %v922
        %v924 = vrot.slane %v919, %v923
        %v928 = vunpack.c.l.b16 %v917
        %v929 = vunpack.c.l.b16 %v918
        %v930 = vpack.c.b16 %v929, %v928
        %v933 = vsel %vm801, %v916, 0
        %935 = vmatprep.subr.bf16.mxu0 0
        %936 = vmatpush1.bf16.msra.mxu0 %v930
        %937 = vmatprep.subr.bf16.mxu0 0
        %938 = vmatpush1.bf16.msra.mxu0 0
        %939 = vmatprep.subr.bf16.mxu0 0
        %940 = vmatpush1.bf16.msra.mxu0 0
        %941 = vmatprep.subr.bf16.mxu0 0
        %942 = vmatpush1.bf16.msra.mxu0 0
        %943 = vmatprep.subr.bf16.mxu0 0
        %944 = vmatpush1.bf16.msra.mxu0 0
        %945 = vmatprep.subr.bf16.mxu0 0
        %946 = vmatpush1.bf16.msra.mxu0 0
        %947 = vmatprep.subr.bf16.mxu0 0
        %948 = vmatpush1.bf16.msra.mxu0 0
        %949 = vmatprep.subr.bf16.mxu0 0
        %950 = vmatpush1.bf16.msra.mxu0 0
        %951 = vmatprep.subr.bf16.mxu0 0
        %952 = vmatpush1.bf16.msra.mxu0 0
        %953 = vmatprep.subr.bf16.mxu0 0
        %954 = vmatpush1.bf16.msra.mxu0 0
        %955 = vmatprep.subr.bf16.mxu0 0
        %956 = vmatpush1.bf16.msra.mxu0 0
        %957 = vmatprep.subr.bf16.mxu0 0
        %958 = vmatpush1.bf16.msra.mxu0 0
        %959 = vmatprep.subr.bf16.mxu0 0
        %960 = vmatpush1.bf16.msra.mxu0 0
        %961 = vmatprep.subr.bf16.mxu0 0
        %962 = vmatpush1.bf16.msra.mxu0 0
        %963 = vmatprep.subr.bf16.mxu0 0
        %964 = vmatpush1.bf16.msra.mxu0 0
        %965 = vmatprep.subr.bf16.mxu0 0
        %966 = vmatpush1.bf16.msra.mxu0 0
        %967 = vmatprep.mubr.bf16.mxu0 0
        %968 = vmatmul.mubr.bf16.gmra.mrb[0].mxu0 %v933
        %v969 = vpop.f32.mrb[0].mxu0
        %v970 = vadd.f32 %v924, %v969
        %v971 = vpop.f32.mrb[0].mxu0
        %v972 = vpop.f32.mrb[0].mxu0
        %v973 = vpop.f32.mrb[0].mxu0
        %974 = vdwg.mxu0
        %v975 = vmax.f32 %v970, 0.0
        %v976 = vpack.c.bf16 %v975, %v975
        %v977 = vld [vmem:[%s11] sm:$0xf]
        %v978 = vld [vmem:[%s11 + $0x4] sm:$0xf]
        %v979 = vld [vmem:[%s12] sm:$0xff]
        %v980 = vld [vmem:[%s12 + $0x8] sm:$0xff]
        %982 = vset.pattern.permute.xlu0 0
        %983 = vperm.xlu0 %982, %v979
        %v984 = vpop.permute.xlu0 %983
        %987 = vset.pattern.permute.xlu0 0
        %988 = vperm.xlu0 %987, %v980
        %v989 = vpop.permute.xlu0 %988
        %v993 = vunpack.c.l.b16 %v977
        %v994 = vunpack.c.l.b16 %v978
        %v995 = vpack.c.b16 %v994, %v993
        %v1000 = vunpack.c.l.b16 %v660
        %v1001 = vunpack.c.l.b16 %v661
        %v1002 = vunpack.c.l.b16 %v662
        %v1003 = vunpack.c.l.b16 %v663
        %v1004 = vpack.c.b16 %v1001, %v1000
        %v1005 = vpack.c.b16 %v1003, %v1002
        %v1009 = vsel %vm698, %v995, 0
        %1011 = vmatprep.subr.bf16.mxu0 0
        %1012 = vmatpush1.bf16.msra.mxu0 %v1004
        %1013 = vmatprep.subr.bf16.mxu0 0
        %1014 = vmatpush1.bf16.msra.mxu0 %v1005
        %1015 = vmatprep.subr.bf16.mxu0 0
        %1016 = vmatpush1.bf16.msra.mxu0 0
        %1017 = vmatprep.subr.bf16.mxu0 0
        %1018 = vmatpush1.bf16.msra.mxu0 0
        %1019 = vmatprep.subr.bf16.mxu0 0
        %1020 = vmatpush1.bf16.msra.mxu0 0
        %1021 = vmatprep.subr.bf16.mxu0 0
        %1022 = vmatpush1.bf16.msra.mxu0 0
        %1023 = vmatprep.subr.bf16.mxu0 0
        %1024 = vmatpush1.bf16.msra.mxu0 0
        %1025 = vmatprep.subr.bf16.mxu0 0
        %1026 = vmatpush1.bf16.msra.mxu0 0
        %1027 = vmatprep.subr.bf16.mxu0 0
        %1028 = vmatpush1.bf16.msra.mxu0 0
        %1029 = vmatprep.subr.bf16.mxu0 0
        %1030 = vmatpush1.bf16.msra.mxu0 0
        %1031 = vmatprep.subr.bf16.mxu0 0
        %1032 = vmatpush1.bf16.msra.mxu0 0
        %1033 = vmatprep.subr.bf16.mxu0 0
        %1034 = vmatpush1.bf16.msra.mxu0 0
        %1035 = vmatprep.subr.bf16.mxu0 0
        %1036 = vmatpush1.bf16.msra.mxu0 0
        %1037 = vmatprep.subr.bf16.mxu0 0
        %1038 = vmatpush1.bf16.msra.mxu0 0
        %1039 = vmatprep.subr.bf16.mxu0 0
        %1040 = vmatpush1.bf16.msra.mxu0 0
        %1041 = vmatprep.subr.bf16.mxu0 0
        %1042 = vmatpush1.bf16.msra.mxu0 0
        %1043 = vmatprep.mubr.bf16.mxu0 0
        %1044 = vmatmul.mubr.bf16.gmra.mrb[0].mxu0 %v1009
        %v1045 = vpop.f32.mrb[0].mxu0
        %v1046 = vadd.f32 %v984, %v1045
        %v1047 = vpop.f32.mrb[0].mxu0
        %v1048 = vpop.f32.mrb[0].mxu0
        %v1049 = vadd.f32 %v989, %v1048
        %v1050 = vpop.f32.mrb[0].mxu0
        %1051 = vdwg.mxu0
        %v1052 = vmax.f32 %v1046, 0.0
        %v1053 = vmax.f32 %v1049, 0.0
        %v1054 = vpack.c.bf16 %v1053, %v1052
        %v1056 = vsel %vm801, %v976, 0
        %1058 = vmatprep.subr.bf16.mxu0 0
        %1059 = vmatpush1.bf16.msra.mxu0 %v848
        %1060 = vmatprep.subr.bf16.mxu0 0
        %1061 = vmatpush1.bf16.msra.mxu0 0
        %1062 = vmatprep.subr.bf16.mxu0 0
        %1063 = vmatpush1.bf16.msra.mxu0 0
        %1064 = vmatprep.subr.bf16.mxu0 0
        %1065 = vmatpush1.bf16.msra.mxu0 0
        %1066 = vmatprep.subr.bf16.mxu0 0
        %1067 = vmatpush1.bf16.msra.mxu0 0
        %1068 = vmatprep.subr.bf16.mxu0 0
        %1069 = vmatpush1.bf16.msra.mxu0 0
        %1070 = vmatprep.subr.bf16.mxu0 0
        %1071 = vmatpush1.bf16.msra.mxu0 0
        %1072 = vmatprep.subr.bf16.mxu0 0
        %1073 = vmatpush1.bf16.msra.mxu0 0
        %1074 = vmatprep.subr.bf16.mxu0 0
        %1075 = vmatpush1.bf16.msra.mxu0 0
        %1076 = vmatprep.subr.bf16.mxu0 0
        %1077 = vmatpush1.bf16.msra.mxu0 0
        %1078 = vmatprep.subr.bf16.mxu0 0
        %1079 = vmatpush1.bf16.msra.mxu0 0
        %1080 = vmatprep.subr.bf16.mxu0 0
        %1081 = vmatpush1.bf16.msra.mxu0 0
        %1082 = vmatprep.subr.bf16.mxu0 0
        %1083 = vmatpush1.bf16.msra.mxu0 0
        %1084 = vmatprep.subr.bf16.mxu0 0
        %1085 = vmatpush1.bf16.msra.mxu0 0
        %1086 = vmatprep.subr.bf16.mxu0 0
        %1087 = vmatpush1.bf16.msra.mxu0 0
        %1088 = vmatprep.subr.bf16.mxu0 0
        %1089 = vmatpush1.bf16.msra.mxu0 0
        %1090 = vmatprep.mubr.bf16.mxu0 0
        %1091 = vmatmul.mubr.bf16.gmra.mrb[0].mxu0 %v1056
        %v1092 = vpop.f32.mrb[0].mxu0
        %v1093 = vadd.f32 0.0, %v1092
        %v1094 = vpop.f32.mrb[0].mxu0
        %v1095 = vpop.f32.mrb[0].mxu0
        %v1096 = vpop.f32.mrb[0].mxu0
        %1097 = vdwg.mxu0
        %v1098 = vmul.f32 %v1093, 0.25
        %v1099 = vrot.slane %v1098, 4
        %v1100 = vmax.f32 %v1098, %v1099
        %v1101 = vrot.slane %v1100, 2
        %v1102 = vmax.f32 %v1100, %v1101
        %v1103 = vrot.slane %v1102, 1
        %v1104 = vmax.f32 %v1102, %v1103
        %v1105 = vsub.f32 %v1098, %v1104
        %v1106 = vmul.f32 %v1105, 1.442695
        %v1107 = vpow.pop %v1106
        %v1108 = vrot.slane %v1107, 4
        %v1109 = vadd.f32 %v1107, %v1108
        %v1110 = vrot.slane %v1109, 2
        %v1111 = vadd.f32 %v1109, %v1110
        %v1112 = vrot.slane %v1111, 1
        %v1113 = vadd.f32 %v1111, %v1112
        %v1114 = vrcp.pop %v1113
        %v1115 = vmul.f32 %v1107, %v1114
        %v1116 = vpack.c.bf16 %v1115, %v1115
        %vm1117 = vcmask 64512
        %v1119 = vsel %vm1117, %v1054, 0
        %vm1121 = vcmask 1043456
        %v1123 = vsel %vm1121, %v1116, 0
        %1125 = vmatprep.subr.bf16.mxu0 0
        %1126 = vmatpush1.bf16.msra.mxu0 %v1123
        %1127 = vmatprep.subr.bf16.mxu0 0
        %1128 = vmatpush1.bf16.msra.mxu0 0
        %1129 = vmatprep.subr.bf16.mxu0 0
        %1130 = vmatpush1.bf16.msra.mxu0 0
        %1131 = vmatprep.subr.bf16.mxu0 0
        %1132 = vmatpush1.bf16.msra.mxu0 0
        %1133 = vmatprep.subr.bf16.mxu0 0
        %1134 = vmatpush1.bf16.msra.mxu0 0
        %1135 = vmatprep.subr.bf16.mxu0 0
        %1136 = vmatpush1.bf16.msra.mxu0 0
        %1137 = vmatprep.subr.bf16.mxu0 0
        %1138 = vmatpush1.bf16.msra.mxu0 0
        %1139 = vmatprep.subr.bf16.mxu0 0
        %1140 = vmatpush1.bf16.msra.mxu0 0
        %1141 = vmatprep.subr.bf16.mxu0 0
        %1142 = vmatpush1.bf16.msra.mxu0 0
        %1143 = vmatprep.subr.bf16.mxu0 0
        %1144 = vmatpush1.bf16.msra.mxu0 0
        %1145 = vmatprep.subr.bf16.mxu0 0
        %1146 = vmatpush1.bf16.msra.mxu0 0
        %1147 = vmatprep.subr.bf16.mxu0 0
        %1148 = vmatpush1.bf16.msra.mxu0 0
        %1149 = vmatprep.subr.bf16.mxu0 0
        %1150 = vmatpush1.bf16.msra.mxu0 0
        %1151 = vmatprep.subr.bf16.mxu0 0
        %1152 = vmatpush1.bf16.msra.mxu0 0
        %1153 = vmatprep.subr.bf16.mxu0 0
        %1154 = vmatpush1.bf16.msra.mxu0 0
        %1155 = vmatprep.subr.bf16.mxu0 0
        %1156 = vmatpush1.bf16.msra.mxu0 0
        %1157 = vmatprep.mubr.bf16.mxu0 0
        %1158 = vmatmul.mubr.bf16.gmra.mrb[0].mxu0 %v1119
        %v1159 = vpop.f32.mrb[0].mxu0
        %v1160 = vadd.f32 0.0, %v1159
        %v1161 = vpop.f32.mrb[0].mxu0
        %v1162 = vpop.f32.mrb[0].mxu0
        %v1163 = vadd.f32 0.0, %v1162
        %v1164 = vpop.f32.mrb[0].mxu0
        %1165 = vdwg.mxu0
        %v1166 = vld [vmem:[%s13] sm:$0xf]
        %v1167 = vld [vmem:[%s13 + $0x4] sm:$0xf]
        %v1168 = vld [vmem:[%s13 + $0x8] sm:$0xf]
        %v1169 = vld [vmem:[%s13 + $0xc] sm:$0xf]
        %v1170 = vpack.c.bf16 %v1163, %v1160
        %v1171 = vld [vmem:[%s14] sm:$0xff]
        %v1172 = vld [vmem:[%s14 + $0x8] sm:$0xff]
        %v1173 = vld [vmem:[%s14 + $0x10] sm:$0xff]
        %v1174 = vld [vmem:[%s14 + $0x18] sm:$0xff]
        %1176 = vset.pattern.permute.xlu0 0
        %1177 = vperm.xlu0 %1176, %v1171
        %v1178 = vpop.permute.xlu0 %1177
        %1181 = vset.pattern.permute.xlu0 0
        %1182 = vperm.xlu0 %1181, %v1172
        %v1183 = vpop.permute.xlu0 %1182
        %1186 = vset.pattern.permute.xlu0 0
        %1187 = vperm.xlu0 %1186, %v1173
        %v1188 = vpop.permute.xlu0 %1187
        %1191 = vset.pattern.permute.xlu0 0
        %1192 = vperm.xlu0 %1191, %v1174
        %v1193 = vpop.permute.xlu0 %1192
        %v1199 = vunpack.c.l.b16 %v1166
        %v1200 = vunpack.c.l.b16 %v1167
        %v1201 = vunpack.c.l.b16 %v1168
        %v1202 = vunpack.c.l.b16 %v1169
        %v1203 = vpack.c.b16 %v1200, %v1199
        %v1204 = vpack.c.b16 %v1202, %v1201
        %v1206 = vsel %vm801, %v1203, 0
        %v1209 = vsel %vm801, %v1204, 0
        %1211 = vmatprep.subr.bf16.mxu0 0
        %1212 = vmatpush1.bf16.msra.mxu0 %v1170
        %1213 = vmatprep.subr.bf16.mxu0 0
        %1214 = vmatpush1.bf16.msra.mxu0 0
        %1215 = vmatprep.subr.bf16.mxu0 0
        %1216 = vmatpush1.bf16.msra.mxu0 0
        %1217 = vmatprep.subr.bf16.mxu0 0
        %1218 = vmatpush1.bf16.msra.mxu0 0
        %1219 = vmatprep.subr.bf16.mxu0 0
        %1220 = vmatpush1.bf16.msra.mxu0 0
        %1221 = vmatprep.subr.bf16.mxu0 0
        %1222 = vmatpush1.bf16.msra.mxu0 0
        %1223 = vmatprep.subr.bf16.mxu0 0
        %1224 = vmatpush1.bf16.msra.mxu0 0
        %1225 = vmatprep.subr.bf16.mxu0 0
        %1226 = vmatpush1.bf16.msra.mxu0 0
        %1227 = vmatprep.subr.bf16.mxu0 0
        %1228 = vmatpush1.bf16.msra.mxu0 0
        %1229 = vmatprep.subr.bf16.mxu0 0
        %1230 = vmatpush1.bf16.msra.mxu0 0
        %1231 = vmatprep.subr.bf16.mxu0 0
        %1232 = vmatpush1.bf16.msra.mxu0 0
        %1233 = vmatprep.subr.bf16.mxu0 0
        %1234 = vmatpush1.bf16.msra.mxu0 0
        %1235 = vmatprep.subr.bf16.mxu0 0
        %1236 = vmatpush1.bf16.msra.mxu0 0
        %1237 = vmatprep.subr.bf16.mxu0 0
        %1238 = vmatpush1.bf16.msra.mxu0 0
        %1239 = vmatprep.subr.bf16.mxu0 0
        %1240 = vmatpush1.bf16.msra.mxu0 0
        %1241 = vmatprep.subr.bf16.mxu0 0
        %1242 = vmatpush1.bf16.msra.mxu0 0
        %1243 = vmatprep.mubr.bf16.mxu0 0
        %1244 = vmatmul.mubr.bf16.gmra.mrb[0].mxu0 %v1206
        %v1245 = vpop.f32.mrb[0].mxu0
        %v1246 = vadd.f32 %v1178, %v1245
        %v1247 = vpop.f32.mrb[0].mxu0
        %v1248 = vpop.f32.mrb[0].mxu0
        %v1249 = vadd.f32 %v1183, %v1248
        %v1250 = vpop.f32.mrb[0].mxu0
        %1251 = vmatprep.mubr.bf16.mxu0 0
        %1252 = vmatmul.mubr.bf16.gmra.mrb[0].mxu0 %v1209
        %v1253 = vpop.f32.mrb[0].mxu0
        %v1254 = vadd.f32 %v1188, %v1253
        %v1255 = vpop.f32.mrb[0].mxu0
        %v1256 = vpop.f32.mrb[0].mxu0
        %v1257 = vadd.f32 %v1193, %v1256
        %v1258 = vpop.f32.mrb[0].mxu0
        %1259 = vdwg.mxu0
        %v1260 = vmax.f32 %v1246, 0.0
        %v1261 = vmax.f32 %v1249, 0.0
        %v1262 = vmax.f32 %v1254, 0.0
        %v1263 = vmax.f32 %v1257, 0.0
        %v1264 = vld [vmem:[%s15] sm:$0xf]
        %v1265 = vld [vmem:[%s15 + $0x4] sm:$0xf]
        %v1266 = vld [vmem:[%s15 + $0x8] sm:$0xf]
        %v1267 = vld [vmem:[%s15 + $0xc] sm:$0xf]
        %v1268 = vpack.c.bf16 %v1261, %v1260
        %v1269 = vpack.c.bf16 %v1263, %v1262
        %v1274 = vunpack.c.l.b16 %v1264
        %v1275 = vunpack.c.l.b16 %v1265
        %v1276 = vunpack.c.l.b16 %v1266
        %v1277 = vunpack.c.l.b16 %v1267
        %v1278 = vpack.c.b16 %v1275, %v1274
        %v1279 = vpack.c.b16 %v1277, %v1276
        %v1281 = vsel %vm698, %v1278, 0
        %v1284 = vsel %vm698, %v1279, 0
        %1286 = vmatprep.subr.bf16.mxu0 0
        %1287 = vmatpush1.bf16.msra.mxu0 %v1268
        %1288 = vmatprep.subr.bf16.mxu0 0
        %1289 = vmatpush1.bf16.msra.mxu0 %v1269
        %1290 = vmatprep.subr.bf16.mxu0 0
        %1291 = vmatpush1.bf16.msra.mxu0 0
        %1292 = vmatprep.subr.bf16.mxu0 0
        %1293 = vmatpush1.bf16.msra.mxu0 0
        %1294 = vmatprep.subr.bf16.mxu0 0
        %1295 = vmatpush1.bf16.msra.mxu0 0
        %1296 = vmatprep.subr.bf16.mxu0 0
        %1297 = vmatpush1.bf16.msra.mxu0 0
        %1298 = vmatprep.subr.bf16.mxu0 0
        %1299 = vmatpush1.bf16.msra.mxu0 0
        %1300 = vmatprep.subr.bf16.mxu0 0
        %1301 = vmatpush1.bf16.msra.mxu0 0
        %1302 = vmatprep.subr.bf16.mxu0 0
        %1303 = vmatpush1.bf16.msra.mxu0 0
        %1304 = vmatprep.subr.bf16.mxu0 0
        %1305 = vmatpush1.bf16.msra.mxu0 0
        %1306 = vmatprep.subr.bf16.mxu0 0
        %1307 = vmatpush1.bf16.msra.mxu0 0
        %1308 = vmatprep.subr.bf16.mxu0 0
        %1309 = vmatpush1.bf16.msra.mxu0 0
        %1310 = vmatprep.subr.bf16.mxu0 0
        %1311 = vmatpush1.bf16.msra.mxu0 0
        %1312 = vmatprep.subr.bf16.mxu0 0
        %1313 = vmatpush1.bf16.msra.mxu0 0
        %1314 = vmatprep.subr.bf16.mxu0 0
        %1315 = vmatpush1.bf16.msra.mxu0 0
        %1316 = vmatprep.subr.bf16.mxu0 0
        %1317 = vmatpush1.bf16.msra.mxu0 0
        %1318 = vmatprep.mubr.bf16.mxu0 0
        %1319 = vmatmul.mubr.bf16.gmra.mrb[0].mxu0 %v1281
        %v1320 = vpop.f32.mrb[0].mxu0
        %v1321 = vadd.f32 %v751, %v1320
        %v1322 = vpop.f32.mrb[0].mxu0
        %v1323 = vpop.f32.mrb[0].mxu0
        %v1324 = vadd.f32 %v754, %v1323
        %v1325 = vpop.f32.mrb[0].mxu0
        %1326 = vmatprep.mubr.bf16.mxu0 0
        %1327 = vmatmul.mubr.bf16.gmra.mrb[0].mxu0 %v1284
        %v1328 = vpop.f32.mrb[0].mxu0
        %v1329 = vadd.f32 %v759, %v1328
        %v1330 = vpop.f32.mrb[0].mxu0
        %v1331 = vpop.f32.mrb[0].mxu0
        %v1332 = vadd.f32 %v762, %v1331
        %v1333 = vpop.f32.mrb[0].mxu0
        %1334 = vdwg.mxu0
        %v1335 = vld [vmem:[%s16] sm:$0xff]
        %v1336 = vld [vmem:[%s16 + $0x8] sm:$0xff]
        %v1337 = vld [vmem:[%s16 + $0x10] sm:$0xff]
        %v1338 = vld [vmem:[%s16 + $0x18] sm:$0xff]
        %1340 = vset.pattern.permute.xlu0 0
        %1341 = vperm.xlu0 %1340, %v1335
        %v1342 = vpop.permute.xlu0 %1341
        %1345 = vset.pattern.permute.xlu0 0
        %1346 = vperm.xlu0 %1345, %v1336
        %v1347 = vpop.permute.xlu0 %1346
        %1350 = vset.pattern.permute.xlu0 0
        %1351 = vperm.xlu0 %1350, %v1337
        %v1352 = vpop.permute.xlu0 %1351
        %1355 = vset.pattern.permute.xlu0 0
        %1356 = vperm.xlu0 %1355, %v1338
        %v1357 = vpop.permute.xlu0 %1356
        %v1359 = vadd.f32 %v1321, %v1342
        %v1360 = vadd.f32 %v1324, %v1347
        %v1361 = vadd.f32 %v1329, %v1352
        %v1362 = vadd.f32 %v1332, %v1357
        %v1363 = vmax.f32 %v1359, 0.0
        %v1364 = vmax.f32 %v1360, 0.0
        %v1365 = vmax.f32 %v1361, 0.0
        %v1366 = vmax.f32 %v1362, 0.0
        %1367 = vst [vmem:[%s645] sm:$0xff] %v1363
        %1368 = vst [vmem:[%s645 + $0x8] sm:$0xff] %v1364
        %1369 = vst [vmem:[%s645 + $0x10] sm:$0xff] %v1365
        %1370 = vst [vmem:[%s645 + $0x18] sm:$0xff] %v1366
        %s1371 = sand.u32 %s427, 1
        %s1372 = scalar_lea.sflag [#allocation4], %s1371
        %s1373 = sand.u32 %s427, 1
        %s1374 = smul.addr %s1373, 32
        %s1375 = scalar_lea.vmem [#allocation3], %s1374
        // Predicated region
        $region130: #{tpu_custom_call.1} parent=124 // pred_check
          %p1376 = pneg %p437
        $region131: #{tpu_custom_call.1} parent=124 // pred_check_branch
          %1378 = sbr.rel (%p1376) target = $region133
        $region132: #{tpu_custom_call.1} parent=124 // pred_region
          %s1380 = ssub.s32 512, 512
          %1381 = vsyncadd %s1372, %s1380
          %s1382 = smul.addr %s35, 8
          %s1383 = sadd.s32 %s36, %s1382
          %s1384 = smul.addr %s1383, 128
          %s1385 = scalar_lea.hbm %s17, %s1384
          %s1386 = sshll.u32 %s1375, 4
          %s1387 = int_to_ptr.vmem [resolvable:$true] %s1386
          %1392 = dma.vmem_to_hbm [thread:$0]  %s1387, 512, %s1385, %s1372, 128, 256, 8
        $region133: #{tpu_custom_call.1} parent=124 // pred_fallthru
          _
      $region125: #{tpu_custom_call.1} parent=5 // pred_fallthru
        _
      %p1393 = scmp.le.s32.totalorder 2, %s26
      // Predicated region
      $region134: #{tpu_custom_call.1} parent=5 // pred_check
        %p1394 = pneg %p1393
      $region135: #{tpu_custom_call.1} parent=5 // pred_check_branch
        %1396 = sbr.rel (%p1394) target = $region137
      $region136: #{tpu_custom_call.1} parent=5 // pred_region
        %s1397 = ssub.s32 %s26, 2
        // Predicated region
        $region138: #{tpu_custom_call.1} parent=136 // pred_check
          %p1398 = pneg %p443
        $region139: #{tpu_custom_call.1} parent=136 // pred_check_branch
          %1400 = sbr.rel (%p1398) target = $region141
        $region140: #{tpu_custom_call.1} parent=136 // pred_region
          %s1401 = sand.u32 %s428, 1
          %s1402 = scalar_lea.sflag [#allocation4], %s1401
          %s1403 = sand.u32 %s428, 1
          %s1404 = smul.addr %s1403, 32
          %s1405 = scalar_lea.vmem [#allocation3], %s1404
          %1406 = dma.done %s1402, 512
        $region141: #{tpu_custom_call.1} parent=136 // pred_fallthru
          _
      $region137: #{tpu_custom_call.1} parent=5 // pred_fallthru
        _
    $region6: #{tpu_custom_call.1} parent=1 // loop_footer
      %s30 = sadd.s32 1, %s26
    $region7: #{tpu_custom_call.1} parent=1 // loop_footer_branch
      %25 = sbr.rel target = $region3
    $region8: #{tpu_custom_call.1} parent=1 // loop_exit
      _
    %1407 = vsyncpa [#allocation4], 1
    %s1408 = scalar_lea.sflag [#allocation4], 1
    %1409 = vsyncpa %s1408, 1

</llo_original>
